<compile_context>
chip_gen: v7x
topology: tpu7x:2x2x1
jax: 0.10.0
libtpu: 0.0.40
codegen_flags: <defaults>
</compile_context>

<pallas_src>
import functools

import numpy as np
import jax
import jax.numpy as jnp
from jax.experimental import pallas as pl
from jax.experimental.pallas import tpu as pltpu

LANE = 128          # vreg lane width -> channel padding target
BN_EPS = 1e-5
TM_CAP = 512        # M-tile cap for the 1x1-conv matmuls (perf review: 256 -> 512)
_PAD = 8            # guard rows above/below the row-stacked scratch image


def _round_up(x, m):
    return (x + m - 1) // m * m


def _pick_tile(dim, cap, align):
    """Largest tile <= cap that divides dim and is a multiple of align.
    Falls back to the full dim (always a legal block, may be VMEM-heavy for
    pathological prime sizes)."""
    if dim <= cap:
        return dim
    t = (cap // align) * align
    while t >= align:
        if dim % t == 0:
            return t
        t -= align
    return dim


@functools.lru_cache(maxsize=None)
def _vmem_limit_bytes():
    """Generation-aware scoped-VMEM cap (v7x: 64 MiB/TC, v5e/v6e: 128 MiB)."""
    try:
        cap = int(pltpu.get_tpu_info().vmem_capacity_bytes)
    except Exception:
        cap = 64 * 1024 * 1024
    return min(64 * 1024 * 1024, (cap * 5) // 8)


def _compiler_params(dimension_semantics):
    return pltpu.CompilerParams(dimension_semantics=dimension_semantics,
                                vmem_limit_bytes=_vmem_limit_bytes())


def _silu(acc):
    # f32 SiLU; the approximate reciprocal runs on the EUP (same unit as exp),
    # keeping the epilogue off the VALU critical path.
    return acc * pl.reciprocal(1.0 + jnp.exp(-acc), approx=True)


# ---------------------------------------------------------------------------
# Kernel 1: cv1 (1x1 conv + BN + SiLU) -> two lane-padded chunk outputs
# ---------------------------------------------------------------------------
def _cv1_kernel(x_ref, w_ref, b_ref, o0_ref, o1_ref, acc_ref):
    @pl.when(pl.program_id(1) == 0)
    def _():
        acc_ref[...] = jnp.zeros_like(acc_ref)

    acc_ref[...] += jnp.dot(x_ref[...], w_ref[...],
                            preferred_element_type=jnp.float32)

    @pl.when(pl.program_id(1) == pl.num_programs(1) - 1)
    def _():
        cp = o0_ref.shape[1]
        y = _silu(acc_ref[...] + b_ref[...])
        # chunk(2): the two halves go straight to two outputs (no wrapper-side
        # slicing, no extra HBM write+read).
        o0_ref[...] = y[:, 0:cp].astype(o0_ref.dtype)
        o1_ref[...] = y[:, cp:2 * cp].astype(o1_ref.dtype)


def cv1_matmul_bias_silu(x2d, w, b):
    """x2d: (M, K) bf16, w: (K, 2*cp) bf16, b: (2*cp,) f32 -> two (M, cp) bf16."""
    M, K = x2d.shape
    cp = w.shape[1] // 2
    tm = _pick_tile(M, TM_CAP, 16)
    tk = _pick_tile(K, 512, LANE)
    grid = (M // tm, K // tk)
    return pl.pallas_call(
        _cv1_kernel,
        out_shape=(jax.ShapeDtypeStruct((M, cp), jnp.bfloat16),
                   jax.ShapeDtypeStruct((M, cp), jnp.bfloat16)),
        grid=grid,
        in_specs=[
            pl.BlockSpec((tm, tk), lambda i, k: (i, k)),
            pl.BlockSpec((tk, 2 * cp), lambda i, k: (k, 0)),
            pl.BlockSpec((1, 2 * cp), lambda i, k: (0, 0)),
        ],
        out_specs=[pl.BlockSpec((tm, cp), lambda i, k: (i, 0)),
                   pl.BlockSpec((tm, cp), lambda i, k: (i, 0))],
        scratch_shapes=[pltpu.VMEM((tm, 2 * cp), jnp.float32)],
        compiler_params=_compiler_params(("parallel", "arbitrary")),
    )(x2d, w, b.reshape(1, 2 * cp))


# ---------------------------------------------------------------------------
# Kernel 2: fused concat(ys) + 1x1 cv2 + bias + SiLU (K-split over the chunks)
# ---------------------------------------------------------------------------
def _make_concat_cv2_kernel(n_chunks):
    def kernel(*refs):
        x_refs = refs[:n_chunks]
        w_ref, b_ref, o_ref = refs[n_chunks], refs[n_chunks + 1], refs[n_chunks + 2]
        acc = jnp.dot(x_refs[0][...], w_ref[0], preferred_element_type=jnp.float32)
        for t in range(1, n_chunks):               # K-split == channel concat
            acc = acc + jnp.dot(x_refs[t][...], w_ref[t],
                                preferred_element_type=jnp.float32)
        o_ref[...] = _silu(acc + b_ref[...]).astype(o_ref.dtype)
    return kernel


def concat_matmul_bias_silu(chunks, w_stacked, b):
    """chunks: list of (M, cp) bf16; w_stacked: (n_chunks, cp, Np) bf16; b: (Np,)."""
    n_chunks, cp, n_out = w_stacked.shape
    M = chunks[0].shape[0]
    tm = _pick_tile(M, TM_CAP, 16)
    tn = _pick_tile(n_out, 256, LANE)
    grid = (M // tm, n_out // tn)
    in_specs = ([pl.BlockSpec((tm, cp), lambda i, j: (i, 0))] * n_chunks
                + [pl.BlockSpec((n_chunks, cp, tn), lambda i, j: (0, 0, j)),
                   pl.BlockSpec((1, tn), lambda i, j: (0, j))])
    return pl.pallas_call(
        _make_concat_cv2_kernel(n_chunks),
        out_shape=jax.ShapeDtypeStruct((M, n_out), jnp.float32),
        grid=grid,
        in_specs=in_specs,
        out_specs=pl.BlockSpec((tm, tn), lambda i, j: (i, j)),
        compiler_params=_compiler_params(("parallel", "parallel")),
    )(*chunks, w_stacked, b.reshape(1, n_out))


# ---------------------------------------------------------------------------
# Kernel 3: fused Bottleneck (3x3 conv -> SiLU -> 3x3 conv -> SiLU [-> +x])
#
# The activation is kept as a 2-D (H*W, C) matrix.  Each conv builds a
# "row-stacked" scratch whose channel block i holds input row (h + i - 1);
# the conv then reduces to three K=3C matmuls (center / left / right column
# taps), with the left/right contributions masked at image-column boundaries.
# ---------------------------------------------------------------------------
def _bottleneck_kernel(x_ref, w1_ref, b1_ref, w2_ref, b2_ref, ml_ref, mr_ref,
                       o_ref, stk_ref, *, HW, IW, C, shortcut):
    xf = x_ref[...].astype(jnp.float32)           # (HW, C)
    mask_l = ml_ref[...]                          # (HW, 1) f32 {0,1}: w != 0
    mask_r = mr_ref[...]                          # (HW, 1) f32 {0,1}: w != IW-1

    def conv3x3(src, w_ref, b_ref):
        # (1) refresh only the small zero halos / guard rows (no full-buffer
        #     zero fill; done every step so the batch axis can be "parallel").
        zwc = jnp.zeros((IW, C), jnp.float32)
        zrow = jnp.zeros((1, 3 * C), jnp.float32)
        stk_ref[_PAD:_PAD + IW, 0:C] = zwc                                   # h == 0 needs row -1
        stk_ref[_PAD + HW - IW:_PAD + HW, 2 * C:3 * C] = zwc                 # h == H-1 needs row H
        stk_ref[_PAD - 1:_PAD, :] = zrow                                     # guard for left-shifted read
        stk_ref[_PAD + HW:_PAD + HW + 1, :] = zrow                           # guard for right-shifted read
        # (2) row-stacked image: channel block i holds input row (h + i - 1).
        stk_ref[_PAD + IW:_PAD + HW, 0:C] = src[0:HW - IW, :]
        stk_ref[_PAD:_PAD + HW, C:2 * C] = src
        stk_ref[_PAD:_PAD + HW - IW, 2 * C:3 * C] = src[IW:HW, :]
        # (3) three K=3C bf16 matmuls: center / left / right column taps.
        pc = stk_ref[_PAD:_PAD + HW, :].astype(jnp.bfloat16)
        pleft = stk_ref[_PAD - 1:_PAD - 1 + HW, :].astype(jnp.bfloat16)
        pright = stk_ref[_PAD + 1:_PAD + 1 + HW, :].astype(jnp.bfloat16)
        acc = jnp.dot(pc, w_ref[1], preferred_element_type=jnp.float32)
        acc = acc + mask_l * jnp.dot(pleft, w_ref[0],
                                     preferred_element_type=jnp.float32)
        acc = acc + mask_r * jnp.dot(pright, w_ref[2],
                                     preferred_element_type=jnp.float32)
        return _silu(acc + b_ref[...])            # (HW, C) f32

    h = conv3x3(xf, w1_ref, b1_ref)
    y = conv3x3(h, w2_ref, b2_ref)
    if shortcut:
        y = y + xf
    o_ref[...] = y.astype(o_ref.dtype)


def bottleneck_pallas(x2d, w1, b1, w2, b2, mask_l, mask_r, *, hw, img_w,
                      shortcut):
    M, cp = x2d.shape
    nb = M // hw
    kernel = functools.partial(_bottleneck_kernel, HW=hw, IW=img_w, C=cp,
                               shortcut=bool(shortcut))
    return pl.pallas_call(
        kernel,
        out_shape=jax.ShapeDtypeStruct((M, cp), jnp.bfloat16),
        grid=(nb,),
        in_specs=[
            pl.BlockSpec((hw, cp), lambda b: (b, 0)),
            pl.BlockSpec((3, 3 * cp, cp), lambda b: (0, 0, 0)),
            pl.BlockSpec((1, cp), lambda b: (0, 0)),
            pl.BlockSpec((3, 3 * cp, cp), lambda b: (0, 0, 0)),
            pl.BlockSpec((1, cp), lambda b: (0, 0)),
            pl.BlockSpec((hw, 1), lambda b: (0, 0)),
            pl.BlockSpec((hw, 1), lambda b: (0, 0)),
        ],
        out_specs=pl.BlockSpec((hw, cp), lambda b: (b, 0)),
        scratch_shapes=[pltpu.VMEM((hw + 2 * _PAD, 3 * cp), jnp.float32)],
        compiler_params=_compiler_params(("parallel",)),
    )(x2d, w1, b1.reshape(1, cp), w2, b2.reshape(1, cp), mask_l, mask_r)


# ---------------------------------------------------------------------------
# Parameter construction (PyTorch-like) + one-time BN folding / lane padding
# ---------------------------------------------------------------------------
def make_conv_params(key, c_in, c_out, k):
    k1, k2, k3, k4, k5 = jax.random.split(key, 5)
    fan_in = c_in * k * k
    return dict(
        w=jax.random.normal(k1, (c_out, c_in, k, k), jnp.float32) / np.sqrt(fan_in),
        gamma=jax.random.uniform(k2, (c_out,), jnp.float32, 0.8, 1.2),
        beta=jax.random.normal(k3, (c_out,), jnp.float32) * 0.1,
        mean=jax.random.normal(k4, (c_out,), jnp.float32) * 0.1,
        var=jax.random.uniform(k5, (c_out,), jnp.float32, 0.5, 1.5),
    )


def init_c2f_params(key, c1, c2, n, e=0.5):
    c = int(c2 * e)
    keys = jax.random.split(key, 2 + 2 * n)
    return dict(
        c=c,
        cv1=make_conv_params(keys[0], c1, 2 * c, 1),
        cv2=make_conv_params(keys[1], (2 + n) * c, c2, 1),
        m=[dict(cv1=make_conv_params(keys[2 + 2 * i], c, c, 3),
                cv2=make_conv_params(keys[3 + 2 * i], c, c, 3))
           for i in range(n)],
    )


def _fold_bn_np(p):
    w = np.asarray(p["w"], np.float32)
    scale = np.asarray(p["gamma"], np.float32) / np.sqrt(
        np.asarray(p["var"], np.float32) + BN_EPS)
    b = np.asarray(p["beta"], np.float32) - np.asarray(p["mean"], np.float32) * scale
    return w * scale[:, None, None, None], b


def _build_cv1_weights(p, c, cp):
    """1x1 conv c1 -> 2c, outputs laid out as two lane-padded chunks of width cp."""
    w, b = _fold_bn_np(p)
    c1 = w.shape[1]
    wm = w[:, :, 0, 0].T                              # (c1, 2c)
    W = np.zeros((c1, 2 * cp), np.float32)
    B = np.zeros((2 * cp,), np.float32)
    W[:, 0:c] = wm[:, 0:c]
    W[:, cp:cp + c] = wm[:, c:2 * c]
    B[0:c] = b[0:c]
    B[cp:cp + c] = b[c:2 * c]
    return jnp.asarray(W, jnp.bfloat16), jnp.asarray(B, jnp.float32)


def _build_conv3x3_weights(p, c, cp):
    """3x3 conv c -> c as three (3*cp, cp) column-tap matrices.

    Index j is the column tap (kw); the 3*cp rows stack the three row taps
    (kh = 0,1,2) to match the row-stacked activation layout used in-kernel.
    """
    w, b = _fold_bn_np(p)                             # (c, c, 3, 3)
    W = np.zeros((3, 3 * cp, cp), np.float32)
    for j in range(3):        # kw
        for i in range(3):    # kh -> stacked channel block i
            W[j, i * cp:i * cp + c, 0:c] = w[:, :, i, j].T
    B = np.zeros((cp,), np.float32)
    B[0:c] = b
    return jnp.asarray(W, jnp.bfloat16), jnp.asarray(B, jnp.float32)


def _build_cv2_weights(p, n_chunks, c, cp, c2, c2p):
    """Final 1x1 conv (2+n)*c -> c2, K-split per ys chunk, lane-padded."""
    w, b = _fold_bn_np(p)
    wm = w[:, :, 0, 0].T                              # ((2+n)*c, c2)
    W = np.zeros((n_chunks, cp, c2p), np.float32)
    for t in range(n_chunks):
        W[t, 0:c, 0:c2] = wm[t * c:(t + 1) * c, :]
    B = np.zeros((c2p,), np.float32)
    B[0:c2] = b
    return jnp.asarray(W, jnp.bfloat16), jnp.asarray(B, jnp.float32)


def prepare_c2f_weights(params):
    """BN folding + lane padding + bf16 cast, done ONCE at init time."""
    c = params["c"]
    cp = _round_up(c, LANE)
    c2 = int(params["cv2"]["w"].shape[0])
    c2p = _round_up(c2, LANE)
    n = len(params["m"])
    w1, b1 = _build_cv1_weights(params["cv1"], c, cp)
    m = []
    for bp in params["m"]:
        wa, ba = _build_conv3x3_weights(bp["cv1"], c, cp)
        wb, bb = _build_conv3x3_weights(bp["cv2"], c, cp)
        m.append((wa, ba, wb, bb))
    w2, b2 = _build_cv2_weights(params["cv2"], 2 + n, c, cp, c2, c2p)
    return dict(c=c, cp=cp, c2=c2, c2p=c2p, w1=w1, b1=b1, m=m, w2=w2, b2=b2)


# ---------------------------------------------------------------------------
# C2f forward (Pallas) — mirrors the PyTorch module's forward()
# ---------------------------------------------------------------------------
def c2f_forward_pallas(x_nchw, prep, shortcut):
    Nb, c1, H, W = x_nchw.shape
    cp, c2, c2p = prep["cp"], prep["c2"], prep["c2p"]
    hw = H * W
    M = Nb * hw

    # NCHW -> (M, c1) bf16 activations.
    x2d = jnp.transpose(x_nchw, (0, 2, 3, 1)).reshape(M, c1).astype(jnp.bfloat16)

    # cv1 (1x1) -> two lane-padded chunks, emitted directly as two outputs.
    y0, y1 = cv1_matmul_bias_silu(x2d, prep["w1"], prep["b1"])
    ys = [y0, y1]

    # Image-column boundary masks for the in-kernel 3x3 convs.
    wpos = np.arange(hw, dtype=np.int32) % W
    mask_l = jnp.asarray((wpos != 0).astype(np.float32).reshape(hw, 1))
    mask_r = jnp.asarray((wpos != W - 1).astype(np.float32).reshape(hw, 1))

    # Bottlenecks: one fused pallas_call each (3x3 -> SiLU -> 3x3 -> SiLU [+x]).
    cur = y1
    for (wa, ba, wb, bb) in prep["m"]:
        cur = bottleneck_pallas(cur, wa, ba, wb, bb, mask_l, mask_r,
                                hw=hw, img_w=W, shortcut=shortcut)
        ys.append(cur)

    # cv2 (1x1) fused with the channel concat (K-split over the ys chunks).
    out = concat_matmul_bias_silu(ys, prep["w2"], prep["b2"])
    out = out.reshape(Nb, H, W, c2p)[..., :c2]
    return jnp.transpose(out, (0, 3, 1, 2))          # NHWC -> NCHW


# ---------------------------------------------------------------------------
# Pure-JAX (XLA, f32) reference for correctness checking
# ---------------------------------------------------------------------------
def _ref_conv_bn_silu(x_nhwc, p, pad):
    w_hwio = jnp.transpose(p["w"], (2, 3, 1, 0))
    y = jax.lax.conv_general_dilated(
        x_nhwc, w_hwio, (1, 1), [(pad, pad), (pad, pad)],
        dimension_numbers=("NHWC", "HWIO", "NHWC"))
    scale = p["gamma"] / jnp.sqrt(p["var"] + BN_EPS)
    y = y * scale + (p["beta"] - p["mean"] * scale)
    return y * jax.nn.sigmoid(y)


def c2f_forward_ref(x_nchw, params, shortcut):
    x = jnp.transpose(x_nchw, (0, 2, 3, 1))
    c = params["c"]
    y = _ref_conv_bn_silu(x, params["cv1"], 0)
    ys = [y[..., :c], y[..., c:]]
    for bp in params["m"]:
        h = _ref_conv_bn_silu(ys[-1], bp["cv1"], 1)
        h = _ref_conv_bn_silu(h, bp["cv2"], 1)
        if shortcut:
            h = ys[-1] + h
        ys.append(h)
    out = _ref_conv_bn_silu(jnp.concatenate(ys, axis=-1), params["cv2"], 0)
    return jnp.transpose(out, (0, 3, 1, 2))


# ---------------------------------------------------------------------------
if __name__ == "__main__":
    # C2f(c1=4, c2=4, n=2, shortcut=True, e=0.5)  -> hidden c = 2
    c1, c2, n, shortcut = 4, 4, 2, True
    N, H, W = 2, 16, 16

    root = jax.random.PRNGKey(0)
    kx, kp = jax.random.split(root)
    x = jax.random.normal(kx, (N, c1, H, W), jnp.float32)   # NCHW, like PyTorch
    params = init_c2f_params(kp, c1, c2, n)

    prep = prepare_c2f_weights(params)          # BN fold + lane pad, once (init)

    out = jax.block_until_ready(c2f_forward_pallas(x, prep, shortcut))
    assert out.shape == (N, c2, H, W)

    ref = jax.block_until_ready(c2f_forward_ref(x, params, shortcut))
    # bf16 activations / folded weights (per perf review) -> loose tolerance.
    np.testing.assert_allclose(np.asarray(out, np.float32), np.asarray(ref),
                               rtol=3e-2, atol=1e-1)
    print("KERNEL_OK")
</pallas_src>

<mosaic_0001>
module attributes {stable_mosaic.version = 11 : i64} {
  func.func @_cv1_kernel(%arg0: i32, %arg1: i32, %arg2: memref<512x4xbf16, #tpu.memory_space<vmem>>, %arg3: memref<4x256xbf16, #tpu.memory_space<vmem>>, %arg4: memref<1x256xf32, #tpu.memory_space<vmem>>, %arg5: memref<512x128xbf16, #tpu.memory_space<vmem>>, %arg6: memref<512x128xbf16, #tpu.memory_space<vmem>>, %arg7: memref<512x256xf32, #tpu.memory_space<vmem>>) attributes {dimension_semantics = [#tpu.dimension_semantics<parallel>, #tpu.dimension_semantics<arbitrary>], iteration_bounds = array<i64: 1, 1>, scalar_prefetch = 0 : i64, scratch_operands = 1 : i64, tpu.core_type = #tpu.core_type<tc>, window_params = [{transform_indices = @transform_0, window_bounds = array<i64: 512, 4>}, {transform_indices = @transform_1, window_bounds = array<i64: 4, 256>}, {pipeline_mode = #tpu.pipeline_mode<synchronous>, transform_indices = @transform_2, window_bounds = array<i64: 1, 256>}, {transform_indices = @transform_3, window_bounds = array<i64: 512, 128>}, {transform_indices = @transform_4, window_bounds = array<i64: 512, 128>}]} {
    %c0_i32 = arith.constant 0 : i32
    %0 = arith.cmpi eq, %arg1, %c0_i32 : i32
    %1 = arith.extui %0 : i1 to i32
    %c0_i32_0 = arith.constant 0 : i32
    %2 = arith.cmpi ne, %1, %c0_i32_0 : i32
    scf.if %2 {
      %cst_10 = arith.constant 0.000000e+00 : f32
      %12 = vector.broadcast %cst_10 : f32 to vector<512x256xf32>
      %c0_11 = arith.constant 0 : index
      %c0_12 = arith.constant 0 : index
      %13 = vector.load %arg7[%c0_11, %c0_12] : memref<512x256xf32, #tpu.memory_space<vmem>>, vector<512x256xf32>
      tpu.vector_store %arg7[%c0_11, %c0_12], %12 {strides = array<i32>} : memref<512x256xf32, #tpu.memory_space<vmem>>, vector<512x256xf32>,
    } else {
    }
    %c0 = arith.constant 0 : index
    %c0_1 = arith.constant 0 : index
    %3 = vector.load %arg7[%c0, %c0_1] : memref<512x256xf32, #tpu.memory_space<vmem>>, vector<512x256xf32>
    %c0_2 = arith.constant 0 : index
    %c0_3 = arith.constant 0 : index
    %4 = vector.load %arg2[%c0_2, %c0_3] : memref<512x4xbf16, #tpu.memory_space<vmem>>, vector<512x4xbf16>
    %c0_4 = arith.constant 0 : index
    %c0_5 = arith.constant 0 : index
    %5 = vector.load %arg3[%c0_4, %c0_5] : memref<4x256xbf16, #tpu.memory_space<vmem>>, vector<4x256xbf16>
    %cst = arith.constant dense<0.000000e+00> : vector<512x256xf32>
    %6 = tpu.matmul %4, %5, %cst {dimension_numbers = #tpu.dot_dimension_numbers<[1], [0], [0], [1], [0, 0, 1, 1], [], []>} : vector<512x4xbf16>, vector<4x256xbf16>, vector<512x256xf32> -> vector<512x256xf32>
    %7 = arith.addf %3, %6 : vector<512x256xf32>
    %c0_6 = arith.constant 0 : index
    %c0_7 = arith.constant 0 : index
    %8 = vector.load %arg7[%c0_6, %c0_7] : memref<512x256xf32, #tpu.memory_space<vmem>>, vector<512x256xf32>
    tpu.vector_store %arg7[%c0_6, %c0_7], %7 {strides = array<i32>} : memref<512x256xf32, #tpu.memory_space<vmem>>, vector<512x256xf32>,
    %c0_i32_8 = arith.constant 0 : i32
    %9 = arith.cmpi eq, %arg1, %c0_i32_8 : i32
    %10 = arith.extui %9 : i1 to i32
    %c0_i32_9 = arith.constant 0 : i32
    %11 = arith.cmpi ne, %10, %c0_i32_9 : i32
    scf.if %11 {
      %c0_10 = arith.constant 0 : index
      %c0_11 = arith.constant 0 : index
      %12 = vector.load %arg7[%c0_10, %c0_11] : memref<512x256xf32, #tpu.memory_space<vmem>>, vector<512x256xf32>
      %c0_12 = arith.constant 0 : index
      %c0_13 = arith.constant 0 : index
      %13 = vector.load %arg4[%c0_12, %c0_13] : memref<1x256xf32, #tpu.memory_space<vmem>>, vector<1x256xf32>
      %14 = vector.broadcast %13 : vector<1x256xf32> to vector<512x256xf32>
      %15 = arith.addf %12, %14 : vector<512x256xf32>
      %cst_14 = arith.constant 0.000000e+00 : f32
      %16 = vector.broadcast %cst_14 : f32 to vector<512x256xf32>
      %17 = arith.subf %16, %15 : vector<512x256xf32>
      %18 = math.exp %17 : vector<512x256xf32>
      %cst_15 = arith.constant 1.000000e+00 : f32
      %19 = vector.broadcast %cst_15 : f32 to vector<512x256xf32>
      %20 = arith.addf %19, %18 : vector<512x256xf32>
      %21 = tpu.reciprocal %20 {approx = true} : vector<512x256xf32> -> vector<512x256xf32>
      %22 = arith.mulf %15, %21 : vector<512x256xf32>
      %23 = vector.extract_strided_slice %22 {offsets = [0, 0], sizes = [512, 128], strides = [1, 1]} : vector<512x256xf32> to vector<512x128xf32>
      %24 = arith.truncf %23 : vector<512x128xf32> to vector<512x128xbf16>
      %c0_16 = arith.constant 0 : index
      %c0_17 = arith.constant 0 : index
      %25 = vector.load %arg5[%c0_16, %c0_17] : memref<512x128xbf16, #tpu.memory_space<vmem>>, vector<512x128xbf16>
      tpu.vector_store %arg5[%c0_16, %c0_17], %24 {strides = array<i32>} : memref<512x128xbf16, #tpu.memory_space<vmem>>, vector<512x128xbf16>,
      %26 = vector.extract_strided_slice %22 {offsets = [0, 128], sizes = [512, 128], strides = [1, 1]} : vector<512x256xf32> to vector<512x128xf32>
      %27 = arith.truncf %26 : vector<512x128xf32> to vector<512x128xbf16>
      %c0_18 = arith.constant 0 : index
      %c0_19 = arith.constant 0 : index
      %28 = vector.load %arg6[%c0_18, %c0_19] : memref<512x128xbf16, #tpu.memory_space<vmem>>, vector<512x128xbf16>
      tpu.vector_store %arg6[%c0_18, %c0_19], %27 {strides = array<i32>} : memref<512x128xbf16, #tpu.memory_space<vmem>>, vector<512x128xbf16>,
    } else {
    }
    return
  }
  func.func @transform_0(%arg0: i32, %arg1: i32) -> (i32, i32) {
    %c0_i32 = arith.constant 0 : i32
    return %arg0, %arg1 : i32, i32
  }
  func.func @transform_1(%arg0: i32, %arg1: i32) -> (i32, i32) {
    %c0_i32 = arith.constant 0 : i32
    %c0_i32_0 = arith.constant 0 : i32
    return %arg1, %c0_i32 : i32, i32
  }
  func.func @transform_2(%arg0: i32, %arg1: i32) -> (i32, i32) {
    %c0_i32 = arith.constant 0 : i32
    %c0_i32_0 = arith.constant 0 : i32
    %c0_i32_1 = arith.constant 0 : i32
    return %c0_i32, %c0_i32_0 : i32, i32
  }
  func.func @transform_3(%arg0: i32, %arg1: i32) -> (i32, i32) {
    %c0_i32 = arith.constant 0 : i32
    %c0_i32_0 = arith.constant 0 : i32
    return %arg0, %c0_i32 : i32, i32
  }
  func.func @transform_4(%arg0: i32, %arg1: i32) -> (i32, i32) {
    %c0_i32 = arith.constant 0 : i32
    %c0_i32_0 = arith.constant 0 : i32
    return %arg0, %c0_i32 : i32, i32
  }
}

</mosaic_0001>

<llo_original>
// kernel: tpu_custom_call.1
$region0: #{tpu_custom_call.1}
  #allocation0 [shape = 'u32[]', space=smem, size = 0x4, offset = 0x4, fixed_abs, tag = 'smem constant byte address 0x4 - core index']
  #allocation1 [shape = 'u32[144,128]{1,0:T(1,128)}', space=vmem, size = 0x12000, scoped, tag = 'internal scratch']
  #allocation2 [shape = 'f32[512,256]{1,0:T(8,128)}', space=vmem, size = 0x80000, scoped, tag = 'scratch operand']
  %s0 = inlined_call_operand.vmem [shape: bf16[512,4], index: 0, kind: input, shape index: {}]
  %s1 = inlined_call_operand.vmem [shape: bf16[4,256], index: 1, kind: input, shape index: {}]
  %s2 = inlined_call_operand.vmem [shape: f32[1,256], index: 2, kind: input, shape index: {}]
  %s3 = inlined_call_operand.hbm [shape: bf16[512,128], index: 3, kind: output, shape index: {0}]
  %s4 = inlined_call_operand.hbm [shape: bf16[512,128], index: 4, kind: output, shape index: {1}]
  %5 = xla_tuple %s3, %s4
  %s6 = sld [smem:[#allocation0]]
  $region38: #{tpu_custom_call.1} parent=0
    _
  %s8 = ssub.s32 1, %s6
  %s9 = scalar_select 0, %s8, %s6
  $region1: #{tpu_custom_call.1} parent=0
    #allocation3 [shape = 'u8[131072]{0}', space=vmem, size = 0x20000, scoped, tag = 'output window, operand 0, single buffered']
    #allocation4 [shape = 's32[1]{0}', space=sflag, size = 0x4, scoped, tag = 'scoped memory for tpu_custom_call.1']
    #allocation5 [shape = 'u8[131072]{0}', space=vmem, size = 0x20000, scoped, tag = 'output window, operand 1, single buffered']
    #allocation6 [shape = 's32[1]{0}', space=sflag, size = 0x4, scoped, tag = 'scoped memory for tpu_custom_call.1']
    %10 = vsyncpa [#allocation4], 0
    %11 = vsyncpa [#allocation6], 0
    // Predicated region
    $region2: #{tpu_custom_call.1} parent=1 // pred_check
      _
    $region3: #{tpu_custom_call.1} parent=1 // pred_check_branch
      %13 = sbr.rel (0) target = $region5
    $region4: #{tpu_custom_call.1} parent=1 // pred_region
      _
    $region5: #{tpu_custom_call.1} parent=1 // pred_fallthru
      _
    // Predicated region
    $region6: #{tpu_custom_call.1} parent=1 // pred_check
      _
    $region7: #{tpu_custom_call.1} parent=1 // pred_check_branch
      %15 = sbr.rel (0) target = $region9
    $region8: #{tpu_custom_call.1} parent=1 // pred_region
      _
    $region9: #{tpu_custom_call.1} parent=1 // pred_fallthru
      _
    // Predicated region
    $region10: #{tpu_custom_call.1} parent=1 // pred_check
      _
    $region11: #{tpu_custom_call.1} parent=1 // pred_check_branch
      %17 = sbr.rel (0) target = $region13
    $region12: #{tpu_custom_call.1} parent=1 // pred_region
      _
    $region13: #{tpu_custom_call.1} parent=1 // pred_fallthru
      _
    %p19 = scmp.eq.s32.totalorder 0, 0
    // Predicated region
    $region14: #{tpu_custom_call.1} parent=1 // pred_check
      %p20 = pneg %p19
    $region15: #{tpu_custom_call.1} parent=1 // pred_check_branch
      %22 = sbr.rel (%p20) target = $region17
    $region16: #{tpu_custom_call.1} parent=1 // pred_region
      %23 = vst [vmem:[#allocation2] sm:$0xff] 0.0
      %24 = vst [vmem:[#allocation2 + $0x8] sm:$0xff] 0.0
      %25 = vst [vmem:[#allocation2 + $0x10] sm:$0xff] 0.0
      %26 = vst [vmem:[#allocation2 + $0x18] sm:$0xff] 0.0
      %27 = vst [vmem:[#allocation2 + $0x20] sm:$0xff] 0.0
      %28 = vst [vmem:[#allocation2 + $0x28] sm:$0xff] 0.0
      %29 = vst [vmem:[#allocation2 + $0x30] sm:$0xff] 0.0
      %30 = vst [vmem:[#allocation2 + $0x38] sm:$0xff] 0.0
      %31 = vst [vmem:[#allocation2 + $0x40] sm:$0xff] 0.0
      %32 = vst [vmem:[#allocation2 + $0x48] sm:$0xff] 0.0
      %33 = vst [vmem:[#allocation2 + $0x50] sm:$0xff] 0.0
      %34 = vst [vmem:[#allocation2 + $0x58] sm:$0xff] 0.0
      %35 = vst [vmem:[#allocation2 + $0x60] sm:$0xff] 0.0
      %36 = vst [vmem:[#allocation2 + $0x68] sm:$0xff] 0.0
      %37 = vst [vmem:[#allocation2 + $0x70] sm:$0xff] 0.0
      %38 = vst [vmem:[#allocation2 + $0x78] sm:$0xff] 0.0
      %39 = vst [vmem:[#allocation2 + $0x80] sm:$0xff] 0.0
      %40 = vst [vmem:[#allocation2 + $0x88] sm:$0xff] 0.0
      %41 = vst [vmem:[#allocation2 + $0x90] sm:$0xff] 0.0
      %42 = vst [vmem:[#allocation2 + $0x98] sm:$0xff] 0.0
      %43 = vst [vmem:[#allocation2 + $0xa0] sm:$0xff] 0.0
      %44 = vst [vmem:[#allocation2 + $0xa8] sm:$0xff] 0.0
      %45 = vst [vmem:[#allocation2 + $0xb0] sm:$0xff] 0.0
      %46 = vst [vmem:[#allocation2 + $0xb8] sm:$0xff] 0.0
      %47 = vst [vmem:[#allocation2 + $0xc0] sm:$0xff] 0.0
      %48 = vst [vmem:[#allocation2 + $0xc8] sm:$0xff] 0.0
      %49 = vst [vmem:[#allocation2 + $0xd0] sm:$0xff] 0.0
      %50 = vst [vmem:[#allocation2 + $0xd8] sm:$0xff] 0.0
      %51 = vst [vmem:[#allocation2 + $0xe0] sm:$0xff] 0.0
      %52 = vst [vmem:[#allocation2 + $0xe8] sm:$0xff] 0.0
      %53 = vst [vmem:[#allocation2 + $0xf0] sm:$0xff] 0.0
      %54 = vst [vmem:[#allocation2 + $0xf8] sm:$0xff] 0.0
      %55 = vst [vmem:[#allocation2 + $0x100] sm:$0xff] 0.0
      %56 = vst [vmem:[#allocation2 + $0x108] sm:$0xff] 0.0
      %57 = vst [vmem:[#allocation2 + $0x110] sm:$0xff] 0.0
      %58 = vst [vmem:[#allocation2 + $0x118] sm:$0xff] 0.0
      %59 = vst [vmem:[#allocation2 + $0x120] sm:$0xff] 0.0
      %60 = vst [vmem:[#allocation2 + $0x128] sm:$0xff] 0.0
      %61 = vst [vmem:[#allocation2 + $0x130] sm:$0xff] 0.0
      %62 = vst [vmem:[#allocation2 + $0x138] sm:$0xff] 0.0
      %63 = vst [vmem:[#allocation2 + $0x140] sm:$0xff] 0.0
      %64 = vst [vmem:[#allocation2 + $0x148] sm:$0xff] 0.0
      %65 = vst [vmem:[#allocation2 + $0x150] sm:$0xff] 0.0
      %66 = vst [vmem:[#allocation2 + $0x158] sm:$0xff] 0.0
      %67 = vst [vmem:[#allocation2 + $0x160] sm:$0xff] 0.0
      %68 = vst [vmem:[#allocation2 + $0x168] sm:$0xff] 0.0
      %69 = vst [vmem:[#allocation2 + $0x170] sm:$0xff] 0.0
      %70 = vst [vmem:[#allocation2 + $0x178] sm:$0xff] 0.0
      %71 = vst [vmem:[#allocation2 + $0x180] sm:$0xff] 0.0
      %72 = vst [vmem:[#allocation2 + $0x188] sm:$0xff] 0.0
      %73 = vst [vmem:[#allocation2 + $0x190] sm:$0xff] 0.0
      %74 = vst [vmem:[#allocation2 + $0x198] sm:$0xff] 0.0
      %75 = vst [vmem:[#allocation2 + $0x1a0] sm:$0xff] 0.0
      %76 = vst [vmem:[#allocation2 + $0x1a8] sm:$0xff] 0.0
      %77 = vst [vmem:[#allocation2 + $0x1b0] sm:$0xff] 0.0
      %78 = vst [vmem:[#allocation2 + $0x1b8] sm:$0xff] 0.0
      %79 = vst [vmem:[#allocation2 + $0x1c0] sm:$0xff] 0.0
      %80 = vst [vmem:[#allocation2 + $0x1c8] sm:$0xff] 0.0
      %81 = vst [vmem:[#allocation2 + $0x1d0] sm:$0xff] 0.0
      %82 = vst [vmem:[#allocation2 + $0x1d8] sm:$0xff] 0.0
      %83 = vst [vmem:[#allocation2 + $0x1e0] sm:$0xff] 0.0
      %84 = vst [vmem:[#allocation2 + $0x1e8] sm:$0xff] 0.0
      %85 = vst [vmem:[#allocation2 + $0x1f0] sm:$0xff] 0.0
      %86 = vst [vmem:[#allocation2 + $0x1f8] sm:$0xff] 0.0
      %87 = vst [vmem:[#allocation2 + $0x200] sm:$0xff] 0.0
      %88 = vst [vmem:[#allocation2 + $0x208] sm:$0xff] 0.0
      %89 = vst [vmem:[#allocation2 + $0x210] sm:$0xff] 0.0
      %90 = vst [vmem:[#allocation2 + $0x218] sm:$0xff] 0.0
      %91 = vst [vmem:[#allocation2 + $0x220] sm:$0xff] 0.0
      %92 = vst [vmem:[#allocation2 + $0x228] sm:$0xff] 0.0
      %93 = vst [vmem:[#allocation2 + $0x230] sm:$0xff] 0.0
      %94 = vst [vmem:[#allocation2 + $0x238] sm:$0xff] 0.0
      %95 = vst [vmem:[#allocation2 + $0x240] sm:$0xff] 0.0
      %96 = vst [vmem:[#allocation2 + $0x248] sm:$0xff] 0.0
      %97 = vst [vmem:[#allocation2 + $0x250] sm:$0xff] 0.0
      %98 = vst [vmem:[#allocation2 + $0x258] sm:$0xff] 0.0
      %99 = vst [vmem:[#allocation2 + $0x260] sm:$0xff] 0.0
      %100 = vst [vmem:[#allocation2 + $0x268] sm:$0xff] 0.0
      %101 = vst [vmem:[#allocation2 + $0x270] sm:$0xff] 0.0
      %102 = vst [vmem:[#allocation2 + $0x278] sm:$0xff] 0.0
      %103 = vst [vmem:[#allocation2 + $0x280] sm:$0xff] 0.0
      %104 = vst [vmem:[#allocation2 + $0x288] sm:$0xff] 0.0
      %105 = vst [vmem:[#allocation2 + $0x290] sm:$0xff] 0.0
      %106 = vst [vmem:[#allocation2 + $0x298] sm:$0xff] 0.0
      %107 = vst [vmem:[#allocation2 + $0x2a0] sm:$0xff] 0.0
      %108 = vst [vmem:[#allocation2 + $0x2a8] sm:$0xff] 0.0
      %109 = vst [vmem:[#allocation2 + $0x2b0] sm:$0xff] 0.0
      %110 = vst [vmem:[#allocation2 + $0x2b8] sm:$0xff] 0.0
      %111 = vst [vmem:[#allocation2 + $0x2c0] sm:$0xff] 0.0
      %112 = vst [vmem:[#allocation2 + $0x2c8] sm:$0xff] 0.0
      %113 = vst [vmem:[#allocation2 + $0x2d0] sm:$0xff] 0.0
      %114 = vst [vmem:[#allocation2 + $0x2d8] sm:$0xff] 0.0
      %115 = vst [vmem:[#allocation2 + $0x2e0] sm:$0xff] 0.0
      %116 = vst [vmem:[#allocation2 + $0x2e8] sm:$0xff] 0.0
      %117 = vst [vmem:[#allocation2 + $0x2f0] sm:$0xff] 0.0
      %118 = vst [vmem:[#allocation2 + $0x2f8] sm:$0xff] 0.0
      %119 = vst [vmem:[#allocation2 + $0x300] sm:$0xff] 0.0
      %120 = vst [vmem:[#allocation2 + $0x308] sm:$0xff] 0.0
      %121 = vst [vmem:[#allocation2 + $0x310] sm:$0xff] 0.0
      %122 = vst [vmem:[#allocation2 + $0x318] sm:$0xff] 0.0
      %123 = vst [vmem:[#allocation2 + $0x320] sm:$0xff] 0.0
      %124 = vst [vmem:[#allocation2 + $0x328] sm:$0xff] 0.0
      %125 = vst [vmem:[#allocation2 + $0x330] sm:$0xff] 0.0
      %126 = vst [vmem:[#allocation2 + $0x338] sm:$0xff] 0.0
      %127 = vst [vmem:[#allocation2 + $0x340] sm:$0xff] 0.0
      %128 = vst [vmem:[#allocation2 + $0x348] sm:$0xff] 0.0
      %129 = vst [vmem:[#allocation2 + $0x350] sm:$0xff] 0.0
      %130 = vst [vmem:[#allocation2 + $0x358] sm:$0xff] 0.0
      %131 = vst [vmem:[#allocation2 + $0x360] sm:$0xff] 0.0
      %132 = vst [vmem:[#allocation2 + $0x368] sm:$0xff] 0.0
      %133 = vst [vmem:[#allocation2 + $0x370] sm:$0xff] 0.0
      %134 = vst [vmem:[#allocation2 + $0x378] sm:$0xff] 0.0
      %135 = vst [vmem:[#allocation2 + $0x380] sm:$0xff] 0.0
      %136 = vst [vmem:[#allocation2 + $0x388] sm:$0xff] 0.0
      %137 = vst [vmem:[#allocation2 + $0x390] sm:$0xff] 0.0
      %138 = vst [vmem:[#allocation2 + $0x398] sm:$0xff] 0.0
      %139 = vst [vmem:[#allocation2 + $0x3a0] sm:$0xff] 0.0
      %140 = vst [vmem:[#allocation2 + $0x3a8] sm:$0xff] 0.0
      %141 = vst [vmem:[#allocation2 + $0x3b0] sm:$0xff] 0.0
      %142 = vst [vmem:[#allocation2 + $0x3b8] sm:$0xff] 0.0
      %143 = vst [vmem:[#allocation2 + $0x3c0] sm:$0xff] 0.0
      %144 = vst [vmem:[#allocation2 + $0x3c8] sm:$0xff] 0.0
      %145 = vst [vmem:[#allocation2 + $0x3d0] sm:$0xff] 0.0
      %146 = vst [vmem:[#allocation2 + $0x3d8] sm:$0xff] 0.0
      %147 = vst [vmem:[#allocation2 + $0x3e0] sm:$0xff] 0.0
      %148 = vst [vmem:[#allocation2 + $0x3e8] sm:$0xff] 0.0
      %149 = vst [vmem:[#allocation2 + $0x3f0] sm:$0xff] 0.0
      %150 = vst [vmem:[#allocation2 + $0x3f8] sm:$0xff] 0.0
    $region17: #{tpu_custom_call.1} parent=1 // pred_fallthru
      _
    %v151 = vld [vmem:[#allocation2] sm:$0xff]
    %v152 = vld [vmem:[#allocation2 + $0x8] sm:$0xff]
    %v153 = vld [vmem:[#allocation2 + $0x10] sm:$0xff]
    %v154 = vld [vmem:[#allocation2 + $0x18] sm:$0xff]
    %v155 = vld [vmem:[#allocation2 + $0x20] sm:$0xff]
    %v156 = vld [vmem:[#allocation2 + $0x28] sm:$0xff]
    %v157 = vld [vmem:[#allocation2 + $0x30] sm:$0xff]
    %v158 = vld [vmem:[#allocation2 + $0x38] sm:$0xff]
    %v159 = vld [vmem:[#allocation2 + $0x40] sm:$0xff]
    %v160 = vld [vmem:[#allocation2 + $0x48] sm:$0xff]
    %v161 = vld [vmem:[#allocation2 + $0x50] sm:$0xff]
    %v162 = vld [vmem:[#allocation2 + $0x58] sm:$0xff]
    %v163 = vld [vmem:[#allocation2 + $0x60] sm:$0xff]
    %v164 = vld [vmem:[#allocation2 + $0x68] sm:$0xff]
    %v165 = vld [vmem:[#allocation2 + $0x70] sm:$0xff]
    %v166 = vld [vmem:[#allocation2 + $0x78] sm:$0xff]
    %v167 = vld [vmem:[#allocation2 + $0x80] sm:$0xff]
    %v168 = vld [vmem:[#allocation2 + $0x88] sm:$0xff]
    %v169 = vld [vmem:[#allocation2 + $0x90] sm:$0xff]
    %v170 = vld [vmem:[#allocation2 + $0x98] sm:$0xff]
    %v171 = vld [vmem:[#allocation2 + $0xa0] sm:$0xff]
    %v172 = vld [vmem:[#allocation2 + $0xa8] sm:$0xff]
    %v173 = vld [vmem:[#allocation2 + $0xb0] sm:$0xff]
    %v174 = vld [vmem:[#allocation2 + $0xb8] sm:$0xff]
    %v175 = vld [vmem:[#allocation2 + $0xc0] sm:$0xff]
    %v176 = vld [vmem:[#allocation2 + $0xc8] sm:$0xff]
    %v177 = vld [vmem:[#allocation2 + $0xd0] sm:$0xff]
    %v178 = vld [vmem:[#allocation2 + $0xd8] sm:$0xff]
    %v179 = vld [vmem:[#allocation2 + $0xe0] sm:$0xff]
    %v180 = vld [vmem:[#allocation2 + $0xe8] sm:$0xff]
    %v181 = vld [vmem:[#allocation2 + $0xf0] sm:$0xff]
    %v182 = vld [vmem:[#allocation2 + $0xf8] sm:$0xff]
    %v183 = vld [vmem:[#allocation2 + $0x100] sm:$0xff]
    %v184 = vld [vmem:[#allocation2 + $0x108] sm:$0xff]
    %v185 = vld [vmem:[#allocation2 + $0x110] sm:$0xff]
    %v186 = vld [vmem:[#allocation2 + $0x118] sm:$0xff]
    %v187 = vld [vmem:[#allocation2 + $0x120] sm:$0xff]
    %v188 = vld [vmem:[#allocation2 + $0x128] sm:$0xff]
    %v189 = vld [vmem:[#allocation2 + $0x130] sm:$0xff]
    %v190 = vld [vmem:[#allocation2 + $0x138] sm:$0xff]
    %v191 = vld [vmem:[#allocation2 + $0x140] sm:$0xff]
    %v192 = vld [vmem:[#allocation2 + $0x148] sm:$0xff]
    %v193 = vld [vmem:[#allocation2 + $0x150] sm:$0xff]
    %v194 = vld [vmem:[#allocation2 + $0x158] sm:$0xff]
    %v195 = vld [vmem:[#allocation2 + $0x160] sm:$0xff]
    %v196 = vld [vmem:[#allocation2 + $0x168] sm:$0xff]
    %v197 = vld [vmem:[#allocation2 + $0x170] sm:$0xff]
    %v198 = vld [vmem:[#allocation2 + $0x178] sm:$0xff]
    %v199 = vld [vmem:[#allocation2 + $0x180] sm:$0xff]
    %v200 = vld [vmem:[#allocation2 + $0x188] sm:$0xff]
    %v201 = vld [vmem:[#allocation2 + $0x190] sm:$0xff]
    %v202 = vld [vmem:[#allocation2 + $0x198] sm:$0xff]
    %v203 = vld [vmem:[#allocation2 + $0x1a0] sm:$0xff]
    %v204 = vld [vmem:[#allocation2 + $0x1a8] sm:$0xff]
    %v205 = vld [vmem:[#allocation2 + $0x1b0] sm:$0xff]
    %v206 = vld [vmem:[#allocation2 + $0x1b8] sm:$0xff]
    %v207 = vld [vmem:[#allocation2 + $0x1c0] sm:$0xff]
    %v208 = vld [vmem:[#allocation2 + $0x1c8] sm:$0xff]
    %v209 = vld [vmem:[#allocation2 + $0x1d0] sm:$0xff]
    %v210 = vld [vmem:[#allocation2 + $0x1d8] sm:$0xff]
    %v211 = vld [vmem:[#allocation2 + $0x1e0] sm:$0xff]
    %v212 = vld [vmem:[#allocation2 + $0x1e8] sm:$0xff]
    %v213 = vld [vmem:[#allocation2 + $0x1f0] sm:$0xff]
    %v214 = vld [vmem:[#allocation2 + $0x1f8] sm:$0xff]
    %v215 = vld [vmem:[#allocation2 + $0x200] sm:$0xff]
    %v216 = vld [vmem:[#allocation2 + $0x208] sm:$0xff]
    %v217 = vld [vmem:[#allocation2 + $0x210] sm:$0xff]
    %v218 = vld [vmem:[#allocation2 + $0x218] sm:$0xff]
    %v219 = vld [vmem:[#allocation2 + $0x220] sm:$0xff]
    %v220 = vld [vmem:[#allocation2 + $0x228] sm:$0xff]
    %v221 = vld [vmem:[#allocation2 + $0x230] sm:$0xff]
    %v222 = vld [vmem:[#allocation2 + $0x238] sm:$0xff]
    %v223 = vld [vmem:[#allocation2 + $0x240] sm:$0xff]
    %v224 = vld [vmem:[#allocation2 + $0x248] sm:$0xff]
    %v225 = vld [vmem:[#allocation2 + $0x250] sm:$0xff]
    %v226 = vld [vmem:[#allocation2 + $0x258] sm:$0xff]
    %v227 = vld [vmem:[#allocation2 + $0x260] sm:$0xff]
    %v228 = vld [vmem:[#allocation2 + $0x268] sm:$0xff]
    %v229 = vld [vmem:[#allocation2 + $0x270] sm:$0xff]
    %v230 = vld [vmem:[#allocation2 + $0x278] sm:$0xff]
    %v231 = vld [vmem:[#allocation2 + $0x280] sm:$0xff]
    %v232 = vld [vmem:[#allocation2 + $0x288] sm:$0xff]
    %v233 = vld [vmem:[#allocation2 + $0x290] sm:$0xff]
    %v234 = vld [vmem:[#allocation2 + $0x298] sm:$0xff]
    %v235 = vld [vmem:[#allocation2 + $0x2a0] sm:$0xff]
    %v236 = vld [vmem:[#allocation2 + $0x2a8] sm:$0xff]
    %v237 = vld [vmem:[#allocation2 + $0x2b0] sm:$0xff]
    %v238 = vld [vmem:[#allocation2 + $0x2b8] sm:$0xff]
    %v239 = vld [vmem:[#allocation2 + $0x2c0] sm:$0xff]
    %v240 = vld [vmem:[#allocation2 + $0x2c8] sm:$0xff]
    %v241 = vld [vmem:[#allocation2 + $0x2d0] sm:$0xff]
    %v242 = vld [vmem:[#allocation2 + $0x2d8] sm:$0xff]
    %v243 = vld [vmem:[#allocation2 + $0x2e0] sm:$0xff]
    %v244 = vld [vmem:[#allocation2 + $0x2e8] sm:$0xff]
    %v245 = vld [vmem:[#allocation2 + $0x2f0] sm:$0xff]
    %v246 = vld [vmem:[#allocation2 + $0x2f8] sm:$0xff]
    %v247 = vld [vmem:[#allocation2 + $0x300] sm:$0xff]
    %v248 = vld [vmem:[#allocation2 + $0x308] sm:$0xff]
    %v249 = vld [vmem:[#allocation2 + $0x310] sm:$0xff]
    %v250 = vld [vmem:[#allocation2 + $0x318] sm:$0xff]
    %v251 = vld [vmem:[#allocation2 + $0x320] sm:$0xff]
    %v252 = vld [vmem:[#allocation2 + $0x328] sm:$0xff]
    %v253 = vld [vmem:[#allocation2 + $0x330] sm:$0xff]
    %v254 = vld [vmem:[#allocation2 + $0x338] sm:$0xff]
    %v255 = vld [vmem:[#allocation2 + $0x340] sm:$0xff]
    %v256 = vld [vmem:[#allocation2 + $0x348] sm:$0xff]
    %v257 = vld [vmem:[#allocation2 + $0x350] sm:$0xff]
    %v258 = vld [vmem:[#allocation2 + $0x358] sm:$0xff]
    %v259 = vld [vmem:[#allocation2 + $0x360] sm:$0xff]
    %v260 = vld [vmem:[#allocation2 + $0x368] sm:$0xff]
    %v261 = vld [vmem:[#allocation2 + $0x370] sm:$0xff]
    %v262 = vld [vmem:[#allocation2 + $0x378] sm:$0xff]
    %v263 = vld [vmem:[#allocation2 + $0x380] sm:$0xff]
    %v264 = vld [vmem:[#allocation2 + $0x388] sm:$0xff]
    %v265 = vld [vmem:[#allocation2 + $0x390] sm:$0xff]
    %v266 = vld [vmem:[#allocation2 + $0x398] sm:$0xff]
    %v267 = vld [vmem:[#allocation2 + $0x3a0] sm:$0xff]
    %v268 = vld [vmem:[#allocation2 + $0x3a8] sm:$0xff]
    %v269 = vld [vmem:[#allocation2 + $0x3b0] sm:$0xff]
    %v270 = vld [vmem:[#allocation2 + $0x3b8] sm:$0xff]
    %v271 = vld [vmem:[#allocation2 + $0x3c0] sm:$0xff]
    %v272 = vld [vmem:[#allocation2 + $0x3c8] sm:$0xff]
    %v273 = vld [vmem:[#allocation2 + $0x3d0] sm:$0xff]
    %v274 = vld [vmem:[#allocation2 + $0x3d8] sm:$0xff]
    %v275 = vld [vmem:[#allocation2 + $0x3e0] sm:$0xff]
    %v276 = vld [vmem:[#allocation2 + $0x3e8] sm:$0xff]
    %v277 = vld [vmem:[#allocation2 + $0x3f0] sm:$0xff]
    %v278 = vld [vmem:[#allocation2 + $0x3f8] sm:$0xff]
    %v279 = vld [vmem:[%s0] sm:$0xf]
    %v280 = vld [vmem:[%s0 + $0x4] sm:$0xf]
    %v281 = vld [vmem:[%s0 + $0x8] sm:$0xf]
    %v282 = vld [vmem:[%s0 + $0xc] sm:$0xf]
    %v283 = vld [vmem:[%s0 + $0x10] sm:$0xf]
    %v284 = vld [vmem:[%s0 + $0x14] sm:$0xf]
    %v285 = vld [vmem:[%s0 + $0x18] sm:$0xf]
    %v286 = vld [vmem:[%s0 + $0x1c] sm:$0xf]
    %v287 = vld [vmem:[%s0 + $0x20] sm:$0xf]
    %v288 = vld [vmem:[%s0 + $0x24] sm:$0xf]
    %v289 = vld [vmem:[%s0 + $0x28] sm:$0xf]
    %v290 = vld [vmem:[%s0 + $0x2c] sm:$0xf]
    %v291 = vld [vmem:[%s0 + $0x30] sm:$0xf]
    %v292 = vld [vmem:[%s0 + $0x34] sm:$0xf]
    %v293 = vld [vmem:[%s0 + $0x38] sm:$0xf]
    %v294 = vld [vmem:[%s0 + $0x3c] sm:$0xf]
    %v295 = vld [vmem:[%s0 + $0x40] sm:$0xf]
    %v296 = vld [vmem:[%s0 + $0x44] sm:$0xf]
    %v297 = vld [vmem:[%s0 + $0x48] sm:$0xf]
    %v298 = vld [vmem:[%s0 + $0x4c] sm:$0xf]
    %v299 = vld [vmem:[%s0 + $0x50] sm:$0xf]
    %v300 = vld [vmem:[%s0 + $0x54] sm:$0xf]
    %v301 = vld [vmem:[%s0 + $0x58] sm:$0xf]
    %v302 = vld [vmem:[%s0 + $0x5c] sm:$0xf]
    %v303 = vld [vmem:[%s0 + $0x60] sm:$0xf]
    %v304 = vld [vmem:[%s0 + $0x64] sm:$0xf]
    %v305 = vld [vmem:[%s0 + $0x68] sm:$0xf]
    %v306 = vld [vmem:[%s0 + $0x6c] sm:$0xf]
    %v307 = vld [vmem:[%s0 + $0x70] sm:$0xf]
    %v308 = vld [vmem:[%s0 + $0x74] sm:$0xf]
    %v309 = vld [vmem:[%s0 + $0x78] sm:$0xf]
    %v310 = vld [vmem:[%s0 + $0x7c] sm:$0xf]
    %v311 = vld [vmem:[%s0 + $0x80] sm:$0xf]
    %v312 = vld [vmem:[%s0 + $0x84] sm:$0xf]
    %v313 = vld [vmem:[%s0 + $0x88] sm:$0xf]
    %v314 = vld [vmem:[%s0 + $0x8c] sm:$0xf]
    %v315 = vld [vmem:[%s0 + $0x90] sm:$0xf]
    %v316 = vld [vmem:[%s0 + $0x94] sm:$0xf]
    %v317 = vld [vmem:[%s0 + $0x98] sm:$0xf]
    %v318 = vld [vmem:[%s0 + $0x9c] sm:$0xf]
    %v319 = vld [vmem:[%s0 + $0xa0] sm:$0xf]
    %v320 = vld [vmem:[%s0 + $0xa4] sm:$0xf]
    %v321 = vld [vmem:[%s0 + $0xa8] sm:$0xf]
    %v322 = vld [vmem:[%s0 + $0xac] sm:$0xf]
    %v323 = vld [vmem:[%s0 + $0xb0] sm:$0xf]
    %v324 = vld [vmem:[%s0 + $0xb4] sm:$0xf]
    %v325 = vld [vmem:[%s0 + $0xb8] sm:$0xf]
    %v326 = vld [vmem:[%s0 + $0xbc] sm:$0xf]
    %v327 = vld [vmem:[%s0 + $0xc0] sm:$0xf]
    %v328 = vld [vmem:[%s0 + $0xc4] sm:$0xf]
    %v329 = vld [vmem:[%s0 + $0xc8] sm:$0xf]
    %v330 = vld [vmem:[%s0 + $0xcc] sm:$0xf]
    %v331 = vld [vmem:[%s0 + $0xd0] sm:$0xf]
    %v332 = vld [vmem:[%s0 + $0xd4] sm:$0xf]
    %v333 = vld [vmem:[%s0 + $0xd8] sm:$0xf]
    %v334 = vld [vmem:[%s0 + $0xdc] sm:$0xf]
    %v335 = vld [vmem:[%s0 + $0xe0] sm:$0xf]
    %v336 = vld [vmem:[%s0 + $0xe4] sm:$0xf]
    %v337 = vld [vmem:[%s0 + $0xe8] sm:$0xf]
    %v338 = vld [vmem:[%s0 + $0xec] sm:$0xf]
    %v339 = vld [vmem:[%s0 + $0xf0] sm:$0xf]
    %v340 = vld [vmem:[%s0 + $0xf4] sm:$0xf]
    %v341 = vld [vmem:[%s0 + $0xf8] sm:$0xf]
    %v342 = vld [vmem:[%s0 + $0xfc] sm:$0xf]
    %v343 = vld [vmem:[%s1] sm:$0xf]
    %v408 = vunpack.c.l.b16 %v279
    %v409 = vunpack.c.l.b16 %v280
    %v410 = vunpack.c.l.b16 %v281
    %v411 = vunpack.c.l.b16 %v282
    %v412 = vunpack.c.l.b16 %v283
    %v413 = vunpack.c.l.b16 %v284
    %v414 = vunpack.c.l.b16 %v285
    %v415 = vunpack.c.l.b16 %v286
    %v416 = vunpack.c.l.b16 %v287
    %v417 = vunpack.c.l.b16 %v288
    %v418 = vunpack.c.l.b16 %v289
    %v419 = vunpack.c.l.b16 %v290
    %v420 = vunpack.c.l.b16 %v291
    %v421 = vunpack.c.l.b16 %v292
    %v422 = vunpack.c.l.b16 %v293
    %v423 = vunpack.c.l.b16 %v294
    %v424 = vunpack.c.l.b16 %v295
    %v425 = vunpack.c.l.b16 %v296
    %v426 = vunpack.c.l.b16 %v297
    %v427 = vunpack.c.l.b16 %v298
    %v428 = vunpack.c.l.b16 %v299
    %v429 = vunpack.c.l.b16 %v300
    %v430 = vunpack.c.l.b16 %v301
    %v431 = vunpack.c.l.b16 %v302
    %v432 = vunpack.c.l.b16 %v303
    %v433 = vunpack.c.l.b16 %v304
    %v434 = vunpack.c.l.b16 %v305
    %v435 = vunpack.c.l.b16 %v306
    %v436 = vunpack.c.l.b16 %v307
    %v437 = vunpack.c.l.b16 %v308
    %v438 = vunpack.c.l.b16 %v309
    %v439 = vunpack.c.l.b16 %v310
    %v440 = vunpack.c.l.b16 %v311
    %v441 = vunpack.c.l.b16 %v312
    %v442 = vunpack.c.l.b16 %v313
    %v443 = vunpack.c.l.b16 %v314
    %v444 = vunpack.c.l.b16 %v315
    %v445 = vunpack.c.l.b16 %v316
    %v446 = vunpack.c.l.b16 %v317
    %v447 = vunpack.c.l.b16 %v318
    %v448 = vunpack.c.l.b16 %v319
    %v449 = vunpack.c.l.b16 %v320
    %v450 = vunpack.c.l.b16 %v321
    %v451 = vunpack.c.l.b16 %v322
    %v452 = vunpack.c.l.b16 %v323
    %v453 = vunpack.c.l.b16 %v324
    %v454 = vunpack.c.l.b16 %v325
    %v455 = vunpack.c.l.b16 %v326
    %v456 = vunpack.c.l.b16 %v327
    %v457 = vunpack.c.l.b16 %v328
    %v458 = vunpack.c.l.b16 %v329
    %v459 = vunpack.c.l.b16 %v330
    %v460 = vunpack.c.l.b16 %v331
    %v461 = vunpack.c.l.b16 %v332
    %v462 = vunpack.c.l.b16 %v333
    %v463 = vunpack.c.l.b16 %v334
    %v464 = vunpack.c.l.b16 %v335
    %v465 = vunpack.c.l.b16 %v336
    %v466 = vunpack.c.l.b16 %v337
    %v467 = vunpack.c.l.b16 %v338
    %v468 = vunpack.c.l.b16 %v339
    %v469 = vunpack.c.l.b16 %v340
    %v470 = vunpack.c.l.b16 %v341
    %v471 = vunpack.c.l.b16 %v342
    %v472 = vpack.c.b16 %v409, %v408
    %v473 = vpack.c.b16 %v411, %v410
    %v474 = vpack.c.b16 %v413, %v412
    %v475 = vpack.c.b16 %v415, %v414
    %v476 = vpack.c.b16 %v417, %v416
    %v477 = vpack.c.b16 %v419, %v418
    %v478 = vpack.c.b16 %v421, %v420
    %v479 = vpack.c.b16 %v423, %v422
    %v480 = vpack.c.b16 %v425, %v424
    %v481 = vpack.c.b16 %v427, %v426
    %v482 = vpack.c.b16 %v429, %v428
    %v483 = vpack.c.b16 %v431, %v430
    %v484 = vpack.c.b16 %v433, %v432
    %v485 = vpack.c.b16 %v435, %v434
    %v486 = vpack.c.b16 %v437, %v436
    %v487 = vpack.c.b16 %v439, %v438
    %v488 = vpack.c.b16 %v441, %v440
    %v489 = vpack.c.b16 %v443, %v442
    %v490 = vpack.c.b16 %v445, %v444
    %v491 = vpack.c.b16 %v447, %v446
    %v492 = vpack.c.b16 %v449, %v448
    %v493 = vpack.c.b16 %v451, %v450
    %v494 = vpack.c.b16 %v453, %v452
    %v495 = vpack.c.b16 %v455, %v454
    %v496 = vpack.c.b16 %v457, %v456
    %v497 = vpack.c.b16 %v459, %v458
    %v498 = vpack.c.b16 %v461, %v460
    %v499 = vpack.c.b16 %v463, %v462
    %v500 = vpack.c.b16 %v465, %v464
    %v501 = vpack.c.b16 %v467, %v466
    %v502 = vpack.c.b16 %v469, %v468
    %v503 = vpack.c.b16 %v471, %v470
    %v506 = vunpack.c.l.s4 1983009808
    %v507 = vunpack.c.0.s8 %v506
    %v508 = vlaneseq
    %v509 = vshrl.u32 %v508, 7
    %v510 = vsub.s32 %v507, %v509
    %v511 = vrot.slane %v343, %v510
    %v512 = vcombine.high %v511, %v511
    %vm513 = vcmask 31744
    %v515 = vsel %vm513, %v472, 0
    %v518 = vsel %vm513, %v473, 0
    %v521 = vsel %vm513, %v474, 0
    %v524 = vsel %vm513, %v475, 0
    %v527 = vsel %vm513, %v476, 0
    %v530 = vsel %vm513, %v477, 0
    %v533 = vsel %vm513, %v478, 0
    %v536 = vsel %vm513, %v479, 0
    %v539 = vsel %vm513, %v480, 0
    %v542 = vsel %vm513, %v481, 0
    %v545 = vsel %vm513, %v482, 0
    %v548 = vsel %vm513, %v483, 0
    %v551 = vsel %vm513, %v484, 0
    %v554 = vsel %vm513, %v485, 0
    %v557 = vsel %vm513, %v486, 0
    %v560 = vsel %vm513, %v487, 0
    %v563 = vsel %vm513, %v488, 0
    %v566 = vsel %vm513, %v489, 0
    %v569 = vsel %vm513, %v490, 0
    %v572 = vsel %vm513, %v491, 0
    %v575 = vsel %vm513, %v492, 0
    %v578 = vsel %vm513, %v493, 0
    %v581 = vsel %vm513, %v494, 0
    %v584 = vsel %vm513, %v495, 0
    %v587 = vsel %vm513, %v496, 0
    %v590 = vsel %vm513, %v497, 0
    %v593 = vsel %vm513, %v498, 0
    %v596 = vsel %vm513, %v499, 0
    %v599 = vsel %vm513, %v500, 0
    %v602 = vsel %vm513, %v501, 0
    %v605 = vsel %vm513, %v502, 0
    %v608 = vsel %vm513, %v503, 0
    %vm610 = vcmask 1041408
    %v612 = vsel %vm610, %v511, 0
    %v615 = vsel %vm610, %v512, 0
    %617 = vmatprep.subr.bf16.mxu0 %v615
    %618 = vmatpush1.bf16.msra.mxu0 %v612
    %619 = vmatprep.subr.bf16.mxu0 0
    %620 = vmatpush1.bf16.msra.mxu0 0
    %621 = vmatprep.subr.bf16.mxu0 0
    %622 = vmatpush1.bf16.msra.mxu0 0
    %623 = vmatprep.subr.bf16.mxu0 0
    %624 = vmatpush1.bf16.msra.mxu0 0
    %625 = vmatprep.subr.bf16.mxu0 0
    %626 = vmatpush1.bf16.msra.mxu0 0
    %627 = vmatprep.subr.bf16.mxu0 0
    %628 = vmatpush1.bf16.msra.mxu0 0
    %629 = vmatprep.subr.bf16.mxu0 0
    %630 = vmatpush1.bf16.msra.mxu0 0
    %631 = vmatprep.subr.bf16.mxu0 0
    %632 = vmatpush1.bf16.msra.mxu0 0
    %633 = vmatprep.subr.bf16.mxu0 0
    %634 = vmatpush1.bf16.msra.mxu0 0
    %635 = vmatprep.subr.bf16.mxu0 0
    %636 = vmatpush1.bf16.msra.mxu0 0
    %637 = vmatprep.subr.bf16.mxu0 0
    %638 = vmatpush1.bf16.msra.mxu0 0
    %639 = vmatprep.subr.bf16.mxu0 0
    %640 = vmatpush1.bf16.msra.mxu0 0
    %641 = vmatprep.subr.bf16.mxu0 0
    %642 = vmatpush1.bf16.msra.mxu0 0
    %643 = vmatprep.subr.bf16.mxu0 0
    %644 = vmatpush1.bf16.msra.mxu0 0
    %645 = vmatprep.subr.bf16.mxu0 0
    %646 = vmatpush1.bf16.msra.mxu0 0
    %647 = vmatprep.subr.bf16.mxu0 0
    %648 = vmatpush1.bf16.msra.mxu0 0
    %649 = vmatprep.mubr.bf16.mxu0 0
    %650 = vmatmul.mubr.bf16.gmra.mrb[0].mxu0 %v515
    %v651 = vpop.f32.mrb[0].mxu0
    %v652 = vadd.f32 0.0, %v651
    %v653 = vpop.f32.mrb[0].mxu0
    %v654 = vadd.f32 0.0, %v653
    %v655 = vpop.f32.mrb[0].mxu0
    %v656 = vadd.f32 0.0, %v655
    %v657 = vpop.f32.mrb[0].mxu0
    %v658 = vadd.f32 0.0, %v657
    %659 = vmatprep.mubr.bf16.mxu0 0
    %660 = vmatmul.mubr.bf16.gmra.mrb[0].mxu0 %v518
    %v661 = vpop.f32.mrb[0].mxu0
    %v662 = vadd.f32 0.0, %v661
    %v663 = vpop.f32.mrb[0].mxu0
    %v664 = vadd.f32 0.0, %v663
    %v665 = vpop.f32.mrb[0].mxu0
    %v666 = vadd.f32 0.0, %v665
    %v667 = vpop.f32.mrb[0].mxu0
    %v668 = vadd.f32 0.0, %v667
    %669 = vmatprep.mubr.bf16.mxu0 0
    %670 = vmatmul.mubr.bf16.gmra.mrb[0].mxu0 %v521
    %v671 = vpop.f32.mrb[0].mxu0
    %v672 = vadd.f32 0.0, %v671
    %v673 = vpop.f32.mrb[0].mxu0
    %v674 = vadd.f32 0.0, %v673
    %v675 = vpop.f32.mrb[0].mxu0
    %v676 = vadd.f32 0.0, %v675
    %v677 = vpop.f32.mrb[0].mxu0
    %v678 = vadd.f32 0.0, %v677
    %679 = vmatprep.mubr.bf16.mxu0 0
    %680 = vmatmul.mubr.bf16.gmra.mrb[0].mxu0 %v524
    %v681 = vpop.f32.mrb[0].mxu0
    %v682 = vadd.f32 0.0, %v681
    %v683 = vpop.f32.mrb[0].mxu0
    %v684 = vadd.f32 0.0, %v683
    %v685 = vpop.f32.mrb[0].mxu0
    %v686 = vadd.f32 0.0, %v685
    %v687 = vpop.f32.mrb[0].mxu0
    %v688 = vadd.f32 0.0, %v687
    %689 = vmatprep.mubr.bf16.mxu0 0
    %690 = vmatmul.mubr.bf16.gmra.mrb[0].mxu0 %v527
    %v691 = vpop.f32.mrb[0].mxu0
    %v692 = vadd.f32 0.0, %v691
    %v693 = vpop.f32.mrb[0].mxu0
    %v694 = vadd.f32 0.0, %v693
    %v695 = vpop.f32.mrb[0].mxu0
    %v696 = vadd.f32 0.0, %v695
    %v697 = vpop.f32.mrb[0].mxu0
    %v698 = vadd.f32 0.0, %v697
    %699 = vmatprep.mubr.bf16.mxu0 0
    %700 = vmatmul.mubr.bf16.gmra.mrb[0].mxu0 %v530
    %v701 = vpop.f32.mrb[0].mxu0
    %v702 = vadd.f32 0.0, %v701
    %v703 = vpop.f32.mrb[0].mxu0
    %v704 = vadd.f32 0.0, %v703
    %v705 = vpop.f32.mrb[0].mxu0
    %v706 = vadd.f32 0.0, %v705
    %v707 = vpop.f32.mrb[0].mxu0
    %v708 = vadd.f32 0.0, %v707
    %709 = vmatprep.mubr.bf16.mxu0 0
    %710 = vmatmul.mubr.bf16.gmra.mrb[0].mxu0 %v533
    %v711 = vpop.f32.mrb[0].mxu0
    %v712 = vadd.f32 0.0, %v711
    %v713 = vpop.f32.mrb[0].mxu0
    %v714 = vadd.f32 0.0, %v713
    %v715 = vpop.f32.mrb[0].mxu0
    %v716 = vadd.f32 0.0, %v715
    %v717 = vpop.f32.mrb[0].mxu0
    %v718 = vadd.f32 0.0, %v717
    %719 = vmatprep.mubr.bf16.mxu0 0
    %720 = vmatmul.mubr.bf16.gmra.mrb[0].mxu0 %v536
    %v721 = vpop.f32.mrb[0].mxu0
    %v722 = vadd.f32 0.0, %v721
    %v723 = vpop.f32.mrb[0].mxu0
    %v724 = vadd.f32 0.0, %v723
    %v725 = vpop.f32.mrb[0].mxu0
    %v726 = vadd.f32 0.0, %v725
    %v727 = vpop.f32.mrb[0].mxu0
    %v728 = vadd.f32 0.0, %v727
    %729 = vmatprep.mubr.bf16.mxu0 0
    %730 = vmatmul.mubr.bf16.gmra.mrb[0].mxu0 %v539
    %v731 = vpop.f32.mrb[0].mxu0
    %v732 = vadd.f32 0.0, %v731
    %v733 = vpop.f32.mrb[0].mxu0
    %v734 = vadd.f32 0.0, %v733
    %v735 = vpop.f32.mrb[0].mxu0
    %v736 = vadd.f32 0.0, %v735
    %v737 = vpop.f32.mrb[0].mxu0
    %v738 = vadd.f32 0.0, %v737
    %739 = vmatprep.mubr.bf16.mxu0 0
    %740 = vmatmul.mubr.bf16.gmra.mrb[0].mxu0 %v542
    %v741 = vpop.f32.mrb[0].mxu0
    %v742 = vadd.f32 0.0, %v741
    %v743 = vpop.f32.mrb[0].mxu0
    %v744 = vadd.f32 0.0, %v743
    %v745 = vpop.f32.mrb[0].mxu0
    %v746 = vadd.f32 0.0, %v745
    %v747 = vpop.f32.mrb[0].mxu0
    %v748 = vadd.f32 0.0, %v747
    %749 = vmatprep.mubr.bf16.mxu0 0
    %750 = vmatmul.mubr.bf16.gmra.mrb[0].mxu0 %v545
    %v751 = vpop.f32.mrb[0].mxu0
    %v752 = vadd.f32 0.0, %v751
    %v753 = vpop.f32.mrb[0].mxu0
    %v754 = vadd.f32 0.0, %v753
    %v755 = vpop.f32.mrb[0].mxu0
    %v756 = vadd.f32 0.0, %v755
    %v757 = vpop.f32.mrb[0].mxu0
    %v758 = vadd.f32 0.0, %v757
    %759 = vmatprep.mubr.bf16.mxu0 0
    %760 = vmatmul.mubr.bf16.gmra.mrb[0].mxu0 %v548
    %v761 = vpop.f32.mrb[0].mxu0
    %v762 = vadd.f32 0.0, %v761
    %v763 = vpop.f32.mrb[0].mxu0
    %v764 = vadd.f32 0.0, %v763
    %v765 = vpop.f32.mrb[0].mxu0
    %v766 = vadd.f32 0.0, %v765
    %v767 = vpop.f32.mrb[0].mxu0
    %v768 = vadd.f32 0.0, %v767
    %769 = vmatprep.mubr.bf16.mxu0 0
    %770 = vmatmul.mubr.bf16.gmra.mrb[0].mxu0 %v551
    %v771 = vpop.f32.mrb[0].mxu0
    %v772 = vadd.f32 0.0, %v771
    %v773 = vpop.f32.mrb[0].mxu0
    %v774 = vadd.f32 0.0, %v773
    %v775 = vpop.f32.mrb[0].mxu0
    %v776 = vadd.f32 0.0, %v775
    %v777 = vpop.f32.mrb[0].mxu0
    %v778 = vadd.f32 0.0, %v777
    %779 = vmatprep.mubr.bf16.mxu0 0
    %780 = vmatmul.mubr.bf16.gmra.mrb[0].mxu0 %v554
    %v781 = vpop.f32.mrb[0].mxu0
    %v782 = vadd.f32 0.0, %v781
    %v783 = vpop.f32.mrb[0].mxu0
    %v784 = vadd.f32 0.0, %v783
    %v785 = vpop.f32.mrb[0].mxu0
    %v786 = vadd.f32 0.0, %v785
    %v787 = vpop.f32.mrb[0].mxu0
    %v788 = vadd.f32 0.0, %v787
    %789 = vmatprep.mubr.bf16.mxu0 0
    %790 = vmatmul.mubr.bf16.gmra.mrb[0].mxu0 %v557
    %v791 = vpop.f32.mrb[0].mxu0
    %v792 = vadd.f32 0.0, %v791
    %v793 = vpop.f32.mrb[0].mxu0
    %v794 = vadd.f32 0.0, %v793
    %v795 = vpop.f32.mrb[0].mxu0
    %v796 = vadd.f32 0.0, %v795
    %v797 = vpop.f32.mrb[0].mxu0
    %v798 = vadd.f32 0.0, %v797
    %799 = vmatprep.mubr.bf16.mxu0 0
    %800 = vmatmul.mubr.bf16.gmra.mrb[0].mxu0 %v560
    %v801 = vpop.f32.mrb[0].mxu0
    %v802 = vadd.f32 0.0, %v801
    %v803 = vpop.f32.mrb[0].mxu0
    %v804 = vadd.f32 0.0, %v803
    %v805 = vpop.f32.mrb[0].mxu0
    %v806 = vadd.f32 0.0, %v805
    %v807 = vpop.f32.mrb[0].mxu0
    %v808 = vadd.f32 0.0, %v807
    %809 = vmatprep.mubr.bf16.mxu0 0
    %810 = vmatmul.mubr.bf16.gmra.mrb[0].mxu0 %v563
    %v811 = vpop.f32.mrb[0].mxu0
    %v812 = vadd.f32 0.0, %v811
    %v813 = vpop.f32.mrb[0].mxu0
    %v814 = vadd.f32 0.0, %v813
    %v815 = vpop.f32.mrb[0].mxu0
    %v816 = vadd.f32 0.0, %v815
    %v817 = vpop.f32.mrb[0].mxu0
    %v818 = vadd.f32 0.0, %v817
    %819 = vmatprep.mubr.bf16.mxu0 0
    %820 = vmatmul.mubr.bf16.gmra.mrb[0].mxu0 %v566
    %v821 = vpop.f32.mrb[0].mxu0
    %v822 = vadd.f32 0.0, %v821
    %v823 = vpop.f32.mrb[0].mxu0
    %v824 = vadd.f32 0.0, %v823
    %v825 = vpop.f32.mrb[0].mxu0
    %v826 = vadd.f32 0.0, %v825
    %v827 = vpop.f32.mrb[0].mxu0
    %v828 = vadd.f32 0.0, %v827
    %829 = vmatprep.mubr.bf16.mxu0 0
    %830 = vmatmul.mubr.bf16.gmra.mrb[0].mxu0 %v569
    %v831 = vpop.f32.mrb[0].mxu0
    %v832 = vadd.f32 0.0, %v831
    %v833 = vpop.f32.mrb[0].mxu0
    %v834 = vadd.f32 0.0, %v833
    %v835 = vpop.f32.mrb[0].mxu0
    %v836 = vadd.f32 0.0, %v835
    %v837 = vpop.f32.mrb[0].mxu0
    %v838 = vadd.f32 0.0, %v837
    %839 = vmatprep.mubr.bf16.mxu0 0
    %840 = vmatmul.mubr.bf16.gmra.mrb[0].mxu0 %v572
    %v841 = vpop.f32.mrb[0].mxu0
    %v842 = vadd.f32 0.0, %v841
    %v843 = vpop.f32.mrb[0].mxu0
    %v844 = vadd.f32 0.0, %v843
    %v845 = vpop.f32.mrb[0].mxu0
    %v846 = vadd.f32 0.0, %v845
    %v847 = vpop.f32.mrb[0].mxu0
    %v848 = vadd.f32 0.0, %v847
    %849 = vmatprep.mubr.bf16.mxu0 0
    %850 = vmatmul.mubr.bf16.gmra.mrb[0].mxu0 %v575
    %v851 = vpop.f32.mrb[0].mxu0
    %v852 = vadd.f32 0.0, %v851
    %v853 = vpop.f32.mrb[0].mxu0
    %v854 = vadd.f32 0.0, %v853
    %v855 = vpop.f32.mrb[0].mxu0
    %v856 = vadd.f32 0.0, %v855
    %v857 = vpop.f32.mrb[0].mxu0
    %v858 = vadd.f32 0.0, %v857
    %859 = vmatprep.mubr.bf16.mxu0 0
    %860 = vmatmul.mubr.bf16.gmra.mrb[0].mxu0 %v578
    %v861 = vpop.f32.mrb[0].mxu0
    %v862 = vadd.f32 0.0, %v861
    %v863 = vpop.f32.mrb[0].mxu0
    %v864 = vadd.f32 0.0, %v863
    %v865 = vpop.f32.mrb[0].mxu0
    %v866 = vadd.f32 0.0, %v865
    %v867 = vpop.f32.mrb[0].mxu0
    %v868 = vadd.f32 0.0, %v867
    %869 = vmatprep.mubr.bf16.mxu0 0
    %870 = vmatmul.mubr.bf16.gmra.mrb[0].mxu0 %v581
    %v871 = vpop.f32.mrb[0].mxu0
    %v872 = vadd.f32 0.0, %v871
    %v873 = vpop.f32.mrb[0].mxu0
    %v874 = vadd.f32 0.0, %v873
    %v875 = vpop.f32.mrb[0].mxu0
    %v876 = vadd.f32 0.0, %v875
    %v877 = vpop.f32.mrb[0].mxu0
    %v878 = vadd.f32 0.0, %v877
    %879 = vmatprep.mubr.bf16.mxu0 0
    %880 = vmatmul.mubr.bf16.gmra.mrb[0].mxu0 %v584
    %v881 = vpop.f32.mrb[0].mxu0
    %v882 = vadd.f32 0.0, %v881
    %v883 = vpop.f32.mrb[0].mxu0
    %v884 = vadd.f32 0.0, %v883
    %v885 = vpop.f32.mrb[0].mxu0
    %v886 = vadd.f32 0.0, %v885
    %v887 = vpop.f32.mrb[0].mxu0
    %v888 = vadd.f32 0.0, %v887
    %889 = vmatprep.mubr.bf16.mxu0 0
    %890 = vmatmul.mubr.bf16.gmra.mrb[0].mxu0 %v587
    %v891 = vpop.f32.mrb[0].mxu0
    %v892 = vadd.f32 0.0, %v891
    %v893 = vpop.f32.mrb[0].mxu0
    %v894 = vadd.f32 0.0, %v893
    %v895 = vpop.f32.mrb[0].mxu0
    %v896 = vadd.f32 0.0, %v895
    %v897 = vpop.f32.mrb[0].mxu0
    %v898 = vadd.f32 0.0, %v897
    %899 = vmatprep.mubr.bf16.mxu0 0
    %900 = vmatmul.mubr.bf16.gmra.mrb[0].mxu0 %v590
    %v901 = vpop.f32.mrb[0].mxu0
    %v902 = vadd.f32 0.0, %v901
    %v903 = vpop.f32.mrb[0].mxu0
    %v904 = vadd.f32 0.0, %v903
    %v905 = vpop.f32.mrb[0].mxu0
    %v906 = vadd.f32 0.0, %v905
    %v907 = vpop.f32.mrb[0].mxu0
    %v908 = vadd.f32 0.0, %v907
    %909 = vmatprep.mubr.bf16.mxu0 0
    %910 = vmatmul.mubr.bf16.gmra.mrb[0].mxu0 %v593
    %v911 = vpop.f32.mrb[0].mxu0
    %v912 = vadd.f32 0.0, %v911
    %v913 = vpop.f32.mrb[0].mxu0
    %v914 = vadd.f32 0.0, %v913
    %v915 = vpop.f32.mrb[0].mxu0
    %v916 = vadd.f32 0.0, %v915
    %v917 = vpop.f32.mrb[0].mxu0
    %v918 = vadd.f32 0.0, %v917
    %919 = vmatprep.mubr.bf16.mxu0 0
    %920 = vmatmul.mubr.bf16.gmra.mrb[0].mxu0 %v596
    %v921 = vpop.f32.mrb[0].mxu0
    %v922 = vadd.f32 0.0, %v921
    %v923 = vpop.f32.mrb[0].mxu0
    %v924 = vadd.f32 0.0, %v923
    %v925 = vpop.f32.mrb[0].mxu0
    %v926 = vadd.f32 0.0, %v925
    %v927 = vpop.f32.mrb[0].mxu0
    %v928 = vadd.f32 0.0, %v927
    %929 = vmatprep.mubr.bf16.mxu0 0
    %930 = vmatmul.mubr.bf16.gmra.mrb[0].mxu0 %v599
    %v931 = vpop.f32.mrb[0].mxu0
    %v932 = vadd.f32 0.0, %v931
    %v933 = vpop.f32.mrb[0].mxu0
    %v934 = vadd.f32 0.0, %v933
    %v935 = vpop.f32.mrb[0].mxu0
    %v936 = vadd.f32 0.0, %v935
    %v937 = vpop.f32.mrb[0].mxu0
    %v938 = vadd.f32 0.0, %v937
    %939 = vmatprep.mubr.bf16.mxu0 0
    %940 = vmatmul.mubr.bf16.gmra.mrb[0].mxu0 %v602
    %v941 = vpop.f32.mrb[0].mxu0
    %v942 = vadd.f32 0.0, %v941
    %v943 = vpop.f32.mrb[0].mxu0
    %v944 = vadd.f32 0.0, %v943
    %v945 = vpop.f32.mrb[0].mxu0
    %v946 = vadd.f32 0.0, %v945
    %v947 = vpop.f32.mrb[0].mxu0
    %v948 = vadd.f32 0.0, %v947
    %949 = vmatprep.mubr.bf16.mxu0 0
    %950 = vmatmul.mubr.bf16.gmra.mrb[0].mxu0 %v605
    %v951 = vpop.f32.mrb[0].mxu0
    %v952 = vadd.f32 0.0, %v951
    %v953 = vpop.f32.mrb[0].mxu0
    %v954 = vadd.f32 0.0, %v953
    %v955 = vpop.f32.mrb[0].mxu0
    %v956 = vadd.f32 0.0, %v955
    %v957 = vpop.f32.mrb[0].mxu0
    %v958 = vadd.f32 0.0, %v957
    %959 = vmatprep.mubr.bf16.mxu0 0
    %960 = vmatmul.mubr.bf16.gmra.mrb[0].mxu0 %v608
    %v961 = vpop.f32.mrb[0].mxu0
    %v962 = vadd.f32 0.0, %v961
    %v963 = vpop.f32.mrb[0].mxu0
    %v964 = vadd.f32 0.0, %v963
    %v965 = vpop.f32.mrb[0].mxu0
    %v966 = vadd.f32 0.0, %v965
    %v967 = vpop.f32.mrb[0].mxu0
    %v968 = vadd.f32 0.0, %v967
    %969 = vdwg.mxu0
    %v970 = vadd.f32 %v151, %v652
    %v971 = vadd.f32 %v152, %v654
    %v972 = vadd.f32 %v153, %v656
    %v973 = vadd.f32 %v154, %v658
    %v974 = vadd.f32 %v155, %v662
    %v975 = vadd.f32 %v156, %v664
    %v976 = vadd.f32 %v157, %v666
    %v977 = vadd.f32 %v158, %v668
    %v978 = vadd.f32 %v159, %v672
    %v979 = vadd.f32 %v160, %v674
    %v980 = vadd.f32 %v161, %v676
    %v981 = vadd.f32 %v162, %v678
    %v982 = vadd.f32 %v163, %v682
    %v983 = vadd.f32 %v164, %v684
    %v984 = vadd.f32 %v165, %v686
    %v985 = vadd.f32 %v166, %v688
    %v986 = vadd.f32 %v167, %v692
    %v987 = vadd.f32 %v168, %v694
    %v988 = vadd.f32 %v169, %v696
    %v989 = vadd.f32 %v170, %v698
    %v990 = vadd.f32 %v171, %v702
    %v991 = vadd.f32 %v172, %v704
    %v992 = vadd.f32 %v173, %v706
    %v993 = vadd.f32 %v174, %v708
    %v994 = vadd.f32 %v175, %v712
    %v995 = vadd.f32 %v176, %v714
    %v996 = vadd.f32 %v177, %v716
    %v997 = vadd.f32 %v178, %v718
    %v998 = vadd.f32 %v179, %v722
    %v999 = vadd.f32 %v180, %v724
    %v1000 = vadd.f32 %v181, %v726
    %v1001 = vadd.f32 %v182, %v728
    %v1002 = vadd.f32 %v183, %v732
    %v1003 = vadd.f32 %v184, %v734
    %v1004 = vadd.f32 %v185, %v736
    %v1005 = vadd.f32 %v186, %v738
    %v1006 = vadd.f32 %v187, %v742
    %v1007 = vadd.f32 %v188, %v744
    %v1008 = vadd.f32 %v189, %v746
    %v1009 = vadd.f32 %v190, %v748
    %v1010 = vadd.f32 %v191, %v752
    %v1011 = vadd.f32 %v192, %v754
    %v1012 = vadd.f32 %v193, %v756
    %v1013 = vadd.f32 %v194, %v758
    %v1014 = vadd.f32 %v195, %v762
    %v1015 = vadd.f32 %v196, %v764
    %v1016 = vadd.f32 %v197, %v766
    %v1017 = vadd.f32 %v198, %v768
    %v1018 = vadd.f32 %v199, %v772
    %v1019 = vadd.f32 %v200, %v774
    %v1020 = vadd.f32 %v201, %v776
    %v1021 = vadd.f32 %v202, %v778
    %v1022 = vadd.f32 %v203, %v782
    %v1023 = vadd.f32 %v204, %v784
    %v1024 = vadd.f32 %v205, %v786
    %v1025 = vadd.f32 %v206, %v788
    %v1026 = vadd.f32 %v207, %v792
    %v1027 = vadd.f32 %v208, %v794
    %v1028 = vadd.f32 %v209, %v796
    %v1029 = vadd.f32 %v210, %v798
    %v1030 = vadd.f32 %v211, %v802
    %v1031 = vadd.f32 %v212, %v804
    %v1032 = vadd.f32 %v213, %v806
    %v1033 = vadd.f32 %v214, %v808
    %v1034 = vadd.f32 %v215, %v812
    %v1035 = vadd.f32 %v216, %v814
    %v1036 = vadd.f32 %v217, %v816
    %v1037 = vadd.f32 %v218, %v818
    %v1038 = vadd.f32 %v219, %v822
    %v1039 = vadd.f32 %v220, %v824
    %v1040 = vadd.f32 %v221, %v826
    %v1041 = vadd.f32 %v222, %v828
    %v1042 = vadd.f32 %v223, %v832
    %v1043 = vadd.f32 %v224, %v834
    %v1044 = vadd.f32 %v225, %v836
    %v1045 = vadd.f32 %v226, %v838
    %v1046 = vadd.f32 %v227, %v842
    %v1047 = vadd.f32 %v228, %v844
    %v1048 = vadd.f32 %v229, %v846
    %v1049 = vadd.f32 %v230, %v848
    %v1050 = vadd.f32 %v231, %v852
    %v1051 = vadd.f32 %v232, %v854
    %v1052 = vadd.f32 %v233, %v856
    %v1053 = vadd.f32 %v234, %v858
    %v1054 = vadd.f32 %v235, %v862
    %v1055 = vadd.f32 %v236, %v864
    %v1056 = vadd.f32 %v237, %v866
    %v1057 = vadd.f32 %v238, %v868
    %v1058 = vadd.f32 %v239, %v872
    %v1059 = vadd.f32 %v240, %v874
    %v1060 = vadd.f32 %v241, %v876
    %v1061 = vadd.f32 %v242, %v878
    %v1062 = vadd.f32 %v243, %v882
    %v1063 = vadd.f32 %v244, %v884
    %v1064 = vadd.f32 %v245, %v886
    %v1065 = vadd.f32 %v246, %v888
    %v1066 = vadd.f32 %v247, %v892
    %v1067 = vadd.f32 %v248, %v894
    %v1068 = vadd.f32 %v249, %v896
    %v1069 = vadd.f32 %v250, %v898
    %v1070 = vadd.f32 %v251, %v902
    %v1071 = vadd.f32 %v252, %v904
    %v1072 = vadd.f32 %v253, %v906
    %v1073 = vadd.f32 %v254, %v908
    %v1074 = vadd.f32 %v255, %v912
    %v1075 = vadd.f32 %v256, %v914
    %v1076 = vadd.f32 %v257, %v916
    %v1077 = vadd.f32 %v258, %v918
    %v1078 = vadd.f32 %v259, %v922
    %v1079 = vadd.f32 %v260, %v924
    %v1080 = vadd.f32 %v261, %v926
    %v1081 = vadd.f32 %v262, %v928
    %v1082 = vadd.f32 %v263, %v932
    %v1083 = vadd.f32 %v264, %v934
    %v1084 = vadd.f32 %v265, %v936
    %v1085 = vadd.f32 %v266, %v938
    %v1086 = vadd.f32 %v267, %v942
    %v1087 = vadd.f32 %v268, %v944
    %v1088 = vadd.f32 %v269, %v946
    %v1089 = vadd.f32 %v270, %v948
    %v1090 = vadd.f32 %v271, %v952
    %v1091 = vadd.f32 %v272, %v954
    %v1092 = vadd.f32 %v273, %v956
    %v1093 = vadd.f32 %v274, %v958
    %v1094 = vadd.f32 %v275, %v962
    %v1095 = vadd.f32 %v276, %v964
    %v1096 = vadd.f32 %v277, %v966
    %v1097 = vadd.f32 %v278, %v968
    %1098 = vst [vmem:[#allocation2] sm:$0xff] %v970
    %1099 = vst [vmem:[#allocation2 + $0x8] sm:$0xff] %v971
    %1100 = vst [vmem:[#allocation2 + $0x10] sm:$0xff] %v972
    %1101 = vst [vmem:[#allocation2 + $0x18] sm:$0xff] %v973
    %1102 = vst [vmem:[#allocation2 + $0x20] sm:$0xff] %v974
    %1103 = vst [vmem:[#allocation2 + $0x28] sm:$0xff] %v975
    %1104 = vst [vmem:[#allocation2 + $0x30] sm:$0xff] %v976
    %1105 = vst [vmem:[#allocation2 + $0x38] sm:$0xff] %v977
    %1106 = vst [vmem:[#allocation2 + $0x40] sm:$0xff] %v978
    %1107 = vst [vmem:[#allocation2 + $0x48] sm:$0xff] %v979
    %1108 = vst [vmem:[#allocation2 + $0x50] sm:$0xff] %v980
    %1109 = vst [vmem:[#allocation2 + $0x58] sm:$0xff] %v981
    %1110 = vst [vmem:[#allocation2 + $0x60] sm:$0xff] %v982
    %1111 = vst [vmem:[#allocation2 + $0x68] sm:$0xff] %v983
    %1112 = vst [vmem:[#allocation2 + $0x70] sm:$0xff] %v984
    %1113 = vst [vmem:[#allocation2 + $0x78] sm:$0xff] %v985
    %1114 = vst [vmem:[#allocation2 + $0x80] sm:$0xff] %v986
    %1115 = vst [vmem:[#allocation2 + $0x88] sm:$0xff] %v987
    %1116 = vst [vmem:[#allocation2 + $0x90] sm:$0xff] %v988
    %1117 = vst [vmem:[#allocation2 + $0x98] sm:$0xff] %v989
    %1118 = vst [vmem:[#allocation2 + $0xa0] sm:$0xff] %v990
    %1119 = vst [vmem:[#allocation2 + $0xa8] sm:$0xff] %v991
    %1120 = vst [vmem:[#allocation2 + $0xb0] sm:$0xff] %v992
    %1121 = vst [vmem:[#allocation2 + $0xb8] sm:$0xff] %v993
    %1122 = vst [vmem:[#allocation2 + $0xc0] sm:$0xff] %v994
    %1123 = vst [vmem:[#allocation2 + $0xc8] sm:$0xff] %v995
    %1124 = vst [vmem:[#allocation2 + $0xd0] sm:$0xff] %v996
    %1125 = vst [vmem:[#allocation2 + $0xd8] sm:$0xff] %v997
    %1126 = vst [vmem:[#allocation2 + $0xe0] sm:$0xff] %v998
    %1127 = vst [vmem:[#allocation2 + $0xe8] sm:$0xff] %v999
    %1128 = vst [vmem:[#allocation2 + $0xf0] sm:$0xff] %v1000
    %1129 = vst [vmem:[#allocation2 + $0xf8] sm:$0xff] %v1001
    %1130 = vst [vmem:[#allocation2 + $0x100] sm:$0xff] %v1002
    %1131 = vst [vmem:[#allocation2 + $0x108] sm:$0xff] %v1003
    %1132 = vst [vmem:[#allocation2 + $0x110] sm:$0xff] %v1004
    %1133 = vst [vmem:[#allocation2 + $0x118] sm:$0xff] %v1005
    %1134 = vst [vmem:[#allocation2 + $0x120] sm:$0xff] %v1006
    %1135 = vst [vmem:[#allocation2 + $0x128] sm:$0xff] %v1007
    %1136 = vst [vmem:[#allocation2 + $0x130] sm:$0xff] %v1008
    %1137 = vst [vmem:[#allocation2 + $0x138] sm:$0xff] %v1009
    %1138 = vst [vmem:[#allocation2 + $0x140] sm:$0xff] %v1010
    %1139 = vst [vmem:[#allocation2 + $0x148] sm:$0xff] %v1011
    %1140 = vst [vmem:[#allocation2 + $0x150] sm:$0xff] %v1012
    %1141 = vst [vmem:[#allocation2 + $0x158] sm:$0xff] %v1013
    %1142 = vst [vmem:[#allocation2 + $0x160] sm:$0xff] %v1014
    %1143 = vst [vmem:[#allocation2 + $0x168] sm:$0xff] %v1015
    %1144 = vst [vmem:[#allocation2 + $0x170] sm:$0xff] %v1016
    %1145 = vst [vmem:[#allocation2 + $0x178] sm:$0xff] %v1017
    %1146 = vst [vmem:[#allocation2 + $0x180] sm:$0xff] %v1018
    %1147 = vst [vmem:[#allocation2 + $0x188] sm:$0xff] %v1019
    %1148 = vst [vmem:[#allocation2 + $0x190] sm:$0xff] %v1020
    %1149 = vst [vmem:[#allocation2 + $0x198] sm:$0xff] %v1021
    %1150 = vst [vmem:[#allocation2 + $0x1a0] sm:$0xff] %v1022
    %1151 = vst [vmem:[#allocation2 + $0x1a8] sm:$0xff] %v1023
    %1152 = vst [vmem:[#allocation2 + $0x1b0] sm:$0xff] %v1024
    %1153 = vst [vmem:[#allocation2 + $0x1b8] sm:$0xff] %v1025
    %1154 = vst [vmem:[#allocation2 + $0x1c0] sm:$0xff] %v1026
    %1155 = vst [vmem:[#allocation2 + $0x1c8] sm:$0xff] %v1027
    %1156 = vst [vmem:[#allocation2 + $0x1d0] sm:$0xff] %v1028
    %1157 = vst [vmem:[#allocation2 + $0x1d8] sm:$0xff] %v1029
    %1158 = vst [vmem:[#allocation2 + $0x1e0] sm:$0xff] %v1030
    %1159 = vst [vmem:[#allocation2 + $0x1e8] sm:$0xff] %v1031
    %1160 = vst [vmem:[#allocation2 + $0x1f0] sm:$0xff] %v1032
    %1161 = vst [vmem:[#allocation2 + $0x1f8] sm:$0xff] %v1033
    %1162 = vst [vmem:[#allocation2 + $0x200] sm:$0xff] %v1034
    %1163 = vst [vmem:[#allocation2 + $0x208] sm:$0xff] %v1035
    %1164 = vst [vmem:[#allocation2 + $0x210] sm:$0xff] %v1036
    %1165 = vst [vmem:[#allocation2 + $0x218] sm:$0xff] %v1037
    %1166 = vst [vmem:[#allocation2 + $0x220] sm:$0xff] %v1038
    %1167 = vst [vmem:[#allocation2 + $0x228] sm:$0xff] %v1039
    %1168 = vst [vmem:[#allocation2 + $0x230] sm:$0xff] %v1040
    %1169 = vst [vmem:[#allocation2 + $0x238] sm:$0xff] %v1041
    %1170 = vst [vmem:[#allocation2 + $0x240] sm:$0xff] %v1042
    %1171 = vst [vmem:[#allocation2 + $0x248] sm:$0xff] %v1043
    %1172 = vst [vmem:[#allocation2 + $0x250] sm:$0xff] %v1044
    %1173 = vst [vmem:[#allocation2 + $0x258] sm:$0xff] %v1045
    %1174 = vst [vmem:[#allocation2 + $0x260] sm:$0xff] %v1046
    %1175 = vst [vmem:[#allocation2 + $0x268] sm:$0xff] %v1047
    %1176 = vst [vmem:[#allocation2 + $0x270] sm:$0xff] %v1048
    %1177 = vst [vmem:[#allocation2 + $0x278] sm:$0xff] %v1049
    %1178 = vst [vmem:[#allocation2 + $0x280] sm:$0xff] %v1050
    %1179 = vst [vmem:[#allocation2 + $0x288] sm:$0xff] %v1051
    %1180 = vst [vmem:[#allocation2 + $0x290] sm:$0xff] %v1052
    %1181 = vst [vmem:[#allocation2 + $0x298] sm:$0xff] %v1053
    %1182 = vst [vmem:[#allocation2 + $0x2a0] sm:$0xff] %v1054
    %1183 = vst [vmem:[#allocation2 + $0x2a8] sm:$0xff] %v1055
    %1184 = vst [vmem:[#allocation2 + $0x2b0] sm:$0xff] %v1056
    %1185 = vst [vmem:[#allocation2 + $0x2b8] sm:$0xff] %v1057
    %1186 = vst [vmem:[#allocation2 + $0x2c0] sm:$0xff] %v1058
    %1187 = vst [vmem:[#allocation2 + $0x2c8] sm:$0xff] %v1059
    %1188 = vst [vmem:[#allocation2 + $0x2d0] sm:$0xff] %v1060
    %1189 = vst [vmem:[#allocation2 + $0x2d8] sm:$0xff] %v1061
    %1190 = vst [vmem:[#allocation2 + $0x2e0] sm:$0xff] %v1062
    %1191 = vst [vmem:[#allocation2 + $0x2e8] sm:$0xff] %v1063
    %1192 = vst [vmem:[#allocation2 + $0x2f0] sm:$0xff] %v1064
    %1193 = vst [vmem:[#allocation2 + $0x2f8] sm:$0xff] %v1065
    %1194 = vst [vmem:[#allocation2 + $0x300] sm:$0xff] %v1066
    %1195 = vst [vmem:[#allocation2 + $0x308] sm:$0xff] %v1067
    %1196 = vst [vmem:[#allocation2 + $0x310] sm:$0xff] %v1068
    %1197 = vst [vmem:[#allocation2 + $0x318] sm:$0xff] %v1069
    %1198 = vst [vmem:[#allocation2 + $0x320] sm:$0xff] %v1070
    %1199 = vst [vmem:[#allocation2 + $0x328] sm:$0xff] %v1071
    %1200 = vst [vmem:[#allocation2 + $0x330] sm:$0xff] %v1072
    %1201 = vst [vmem:[#allocation2 + $0x338] sm:$0xff] %v1073
    %1202 = vst [vmem:[#allocation2 + $0x340] sm:$0xff] %v1074
    %1203 = vst [vmem:[#allocation2 + $0x348] sm:$0xff] %v1075
    %1204 = vst [vmem:[#allocation2 + $0x350] sm:$0xff] %v1076
    %1205 = vst [vmem:[#allocation2 + $0x358] sm:$0xff] %v1077
    %1206 = vst [vmem:[#allocation2 + $0x360] sm:$0xff] %v1078
    %1207 = vst [vmem:[#allocation2 + $0x368] sm:$0xff] %v1079
    %1208 = vst [vmem:[#allocation2 + $0x370] sm:$0xff] %v1080
    %1209 = vst [vmem:[#allocation2 + $0x378] sm:$0xff] %v1081
    %1210 = vst [vmem:[#allocation2 + $0x380] sm:$0xff] %v1082
    %1211 = vst [vmem:[#allocation2 + $0x388] sm:$0xff] %v1083
    %1212 = vst [vmem:[#allocation2 + $0x390] sm:$0xff] %v1084
    %1213 = vst [vmem:[#allocation2 + $0x398] sm:$0xff] %v1085
    %1214 = vst [vmem:[#allocation2 + $0x3a0] sm:$0xff] %v1086
    %1215 = vst [vmem:[#allocation2 + $0x3a8] sm:$0xff] %v1087
    %1216 = vst [vmem:[#allocation2 + $0x3b0] sm:$0xff] %v1088
    %1217 = vst [vmem:[#allocation2 + $0x3b8] sm:$0xff] %v1089
    %1218 = vst [vmem:[#allocation2 + $0x3c0] sm:$0xff] %v1090
    %1219 = vst [vmem:[#allocation2 + $0x3c8] sm:$0xff] %v1091
    %1220 = vst [vmem:[#allocation2 + $0x3d0] sm:$0xff] %v1092
    %1221 = vst [vmem:[#allocation2 + $0x3d8] sm:$0xff] %v1093
    %1222 = vst [vmem:[#allocation2 + $0x3e0] sm:$0xff] %v1094
    %1223 = vst [vmem:[#allocation2 + $0x3e8] sm:$0xff] %v1095
    %1224 = vst [vmem:[#allocation2 + $0x3f0] sm:$0xff] %v1096
    %1225 = vst [vmem:[#allocation2 + $0x3f8] sm:$0xff] %v1097
    // Predicated region
    $region18: #{tpu_custom_call.1} parent=1 // pred_check
      %p1226 = pneg %p19
    $region19: #{tpu_custom_call.1} parent=1 // pred_check_branch
      %1228 = sbr.rel (%p1226) target = $region21
    $region20: #{tpu_custom_call.1} parent=1 // pred_region
      %v1229 = vld [vmem:[#allocation2] sm:$0xff]
      %v1230 = vld [vmem:[#allocation2 + $0x8] sm:$0xff]
      %v1231 = vld [vmem:[#allocation2 + $0x10] sm:$0xff]
      %v1232 = vld [vmem:[#allocation2 + $0x18] sm:$0xff]
      %v1233 = vld [vmem:[#allocation2 + $0x20] sm:$0xff]
      %v1234 = vld [vmem:[#allocation2 + $0x28] sm:$0xff]
      %v1235 = vld [vmem:[#allocation2 + $0x30] sm:$0xff]
      %v1236 = vld [vmem:[#allocation2 + $0x38] sm:$0xff]
      %v1237 = vld [vmem:[#allocation2 + $0x40] sm:$0xff]
      %v1238 = vld [vmem:[#allocation2 + $0x48] sm:$0xff]
      %v1239 = vld [vmem:[#allocation2 + $0x50] sm:$0xff]
      %v1240 = vld [vmem:[#allocation2 + $0x58] sm:$0xff]
      %v1241 = vld [vmem:[#allocation2 + $0x60] sm:$0xff]
      %v1242 = vld [vmem:[#allocation2 + $0x68] sm:$0xff]
      %v1243 = vld [vmem:[#allocation2 + $0x70] sm:$0xff]
      %v1244 = vld [vmem:[#allocation2 + $0x78] sm:$0xff]
      %v1245 = vld [vmem:[#allocation2 + $0x80] sm:$0xff]
      %v1246 = vld [vmem:[#allocation2 + $0x88] sm:$0xff]
      %v1247 = vld [vmem:[#allocation2 + $0x90] sm:$0xff]
      %v1248 = vld [vmem:[#allocation2 + $0x98] sm:$0xff]
      %v1249 = vld [vmem:[#allocation2 + $0xa0] sm:$0xff]
      %v1250 = vld [vmem:[#allocation2 + $0xa8] sm:$0xff]
      %v1251 = vld [vmem:[#allocation2 + $0xb0] sm:$0xff]
      %v1252 = vld [vmem:[#allocation2 + $0xb8] sm:$0xff]
      %v1253 = vld [vmem:[#allocation2 + $0xc0] sm:$0xff]
      %v1254 = vld [vmem:[#allocation2 + $0xc8] sm:$0xff]
      %v1255 = vld [vmem:[#allocation2 + $0xd0] sm:$0xff]
      %v1256 = vld [vmem:[#allocation2 + $0xd8] sm:$0xff]
      %v1257 = vld [vmem:[#allocation2 + $0xe0] sm:$0xff]
      %v1258 = vld [vmem:[#allocation2 + $0xe8] sm:$0xff]
      %v1259 = vld [vmem:[#allocation2 + $0xf0] sm:$0xff]
      %v1260 = vld [vmem:[#allocation2 + $0xf8] sm:$0xff]
      %v1261 = vld [vmem:[#allocation2 + $0x100] sm:$0xff]
      %v1262 = vld [vmem:[#allocation2 + $0x108] sm:$0xff]
      %v1263 = vld [vmem:[#allocation2 + $0x110] sm:$0xff]
      %v1264 = vld [vmem:[#allocation2 + $0x118] sm:$0xff]
      %v1265 = vld [vmem:[#allocation2 + $0x120] sm:$0xff]
      %v1266 = vld [vmem:[#allocation2 + $0x128] sm:$0xff]
      %v1267 = vld [vmem:[#allocation2 + $0x130] sm:$0xff]
      %v1268 = vld [vmem:[#allocation2 + $0x138] sm:$0xff]
      %v1269 = vld [vmem:[#allocation2 + $0x140] sm:$0xff]
      %v1270 = vld [vmem:[#allocation2 + $0x148] sm:$0xff]
      %v1271 = vld [vmem:[#allocation2 + $0x150] sm:$0xff]
      %v1272 = vld [vmem:[#allocation2 + $0x158] sm:$0xff]
      %v1273 = vld [vmem:[#allocation2 + $0x160] sm:$0xff]
      %v1274 = vld [vmem:[#allocation2 + $0x168] sm:$0xff]
      %v1275 = vld [vmem:[#allocation2 + $0x170] sm:$0xff]
      %v1276 = vld [vmem:[#allocation2 + $0x178] sm:$0xff]
      %v1277 = vld [vmem:[#allocation2 + $0x180] sm:$0xff]
      %v1278 = vld [vmem:[#allocation2 + $0x188] sm:$0xff]
      %v1279 = vld [vmem:[#allocation2 + $0x190] sm:$0xff]
      %v1280 = vld [vmem:[#allocation2 + $0x198] sm:$0xff]
      %v1281 = vld [vmem:[#allocation2 + $0x1a0] sm:$0xff]
      %v1282 = vld [vmem:[#allocation2 + $0x1a8] sm:$0xff]
      %v1283 = vld [vmem:[#allocation2 + $0x1b0] sm:$0xff]
      %v1284 = vld [vmem:[#allocation2 + $0x1b8] sm:$0xff]
      %v1285 = vld [vmem:[#allocation2 + $0x1c0] sm:$0xff]
      %v1286 = vld [vmem:[#allocation2 + $0x1c8] sm:$0xff]
      %v1287 = vld [vmem:[#allocation2 + $0x1d0] sm:$0xff]
      %v1288 = vld [vmem:[#allocation2 + $0x1d8] sm:$0xff]
      %v1289 = vld [vmem:[#allocation2 + $0x1e0] sm:$0xff]
      %v1290 = vld [vmem:[#allocation2 + $0x1e8] sm:$0xff]
      %v1291 = vld [vmem:[#allocation2 + $0x1f0] sm:$0xff]
      %v1292 = vld [vmem:[#allocation2 + $0x1f8] sm:$0xff]
      %v1293 = vld [vmem:[#allocation2 + $0x200] sm:$0xff]
      %v1294 = vld [vmem:[#allocation2 + $0x208] sm:$0xff]
      %v1295 = vld [vmem:[#allocation2 + $0x210] sm:$0xff]
      %v1296 = vld [vmem:[#allocation2 + $0x218] sm:$0xff]
      %v1297 = vld [vmem:[#allocation2 + $0x220] sm:$0xff]
      %v1298 = vld [vmem:[#allocation2 + $0x228] sm:$0xff]
      %v1299 = vld [vmem:[#allocation2 + $0x230] sm:$0xff]
      %v1300 = vld [vmem:[#allocation2 + $0x238] sm:$0xff]
      %v1301 = vld [vmem:[#allocation2 + $0x240] sm:$0xff]
      %v1302 = vld [vmem:[#allocation2 + $0x248] sm:$0xff]
      %v1303 = vld [vmem:[#allocation2 + $0x250] sm:$0xff]
      %v1304 = vld [vmem:[#allocation2 + $0x258] sm:$0xff]
      %v1305 = vld [vmem:[#allocation2 + $0x260] sm:$0xff]
      %v1306 = vld [vmem:[#allocation2 + $0x268] sm:$0xff]
      %v1307 = vld [vmem:[#allocation2 + $0x270] sm:$0xff]
      %v1308 = vld [vmem:[#allocation2 + $0x278] sm:$0xff]
      %v1309 = vld [vmem:[#allocation2 + $0x280] sm:$0xff]
      %v1310 = vld [vmem:[#allocation2 + $0x288] sm:$0xff]
      %v1311 = vld [vmem:[#allocation2 + $0x290] sm:$0xff]
      %v1312 = vld [vmem:[#allocation2 + $0x298] sm:$0xff]
      %v1313 = vld [vmem:[#allocation2 + $0x2a0] sm:$0xff]
      %v1314 = vld [vmem:[#allocation2 + $0x2a8] sm:$0xff]
      %v1315 = vld [vmem:[#allocation2 + $0x2b0] sm:$0xff]
      %v1316 = vld [vmem:[#allocation2 + $0x2b8] sm:$0xff]
      %v1317 = vld [vmem:[#allocation2 + $0x2c0] sm:$0xff]
      %v1318 = vld [vmem:[#allocation2 + $0x2c8] sm:$0xff]
      %v1319 = vld [vmem:[#allocation2 + $0x2d0] sm:$0xff]
      %v1320 = vld [vmem:[#allocation2 + $0x2d8] sm:$0xff]
      %v1321 = vld [vmem:[#allocation2 + $0x2e0] sm:$0xff]
      %v1322 = vld [vmem:[#allocation2 + $0x2e8] sm:$0xff]
      %v1323 = vld [vmem:[#allocation2 + $0x2f0] sm:$0xff]
      %v1324 = vld [vmem:[#allocation2 + $0x2f8] sm:$0xff]
      %v1325 = vld [vmem:[#allocation2 + $0x300] sm:$0xff]
      %v1326 = vld [vmem:[#allocation2 + $0x308] sm:$0xff]
      %v1327 = vld [vmem:[#allocation2 + $0x310] sm:$0xff]
      %v1328 = vld [vmem:[#allocation2 + $0x318] sm:$0xff]
      %v1329 = vld [vmem:[#allocation2 + $0x320] sm:$0xff]
      %v1330 = vld [vmem:[#allocation2 + $0x328] sm:$0xff]
      %v1331 = vld [vmem:[#allocation2 + $0x330] sm:$0xff]
      %v1332 = vld [vmem:[#allocation2 + $0x338] sm:$0xff]
      %v1333 = vld [vmem:[#allocation2 + $0x340] sm:$0xff]
      %v1334 = vld [vmem:[#allocation2 + $0x348] sm:$0xff]
      %v1335 = vld [vmem:[#allocation2 + $0x350] sm:$0xff]
      %v1336 = vld [vmem:[#allocation2 + $0x358] sm:$0xff]
      %v1337 = vld [vmem:[#allocation2 + $0x360] sm:$0xff]
      %v1338 = vld [vmem:[#allocation2 + $0x368] sm:$0xff]
      %v1339 = vld [vmem:[#allocation2 + $0x370] sm:$0xff]
      %v1340 = vld [vmem:[#allocation2 + $0x378] sm:$0xff]
      %v1341 = vld [vmem:[#allocation2 + $0x380] sm:$0xff]
      %v1342 = vld [vmem:[#allocation2 + $0x388] sm:$0xff]
      %v1343 = vld [vmem:[#allocation2 + $0x390] sm:$0xff]
      %v1344 = vld [vmem:[#allocation2 + $0x398] sm:$0xff]
      %v1345 = vld [vmem:[#allocation2 + $0x3a0] sm:$0xff]
      %v1346 = vld [vmem:[#allocation2 + $0x3a8] sm:$0xff]
      %v1347 = vld [vmem:[#allocation2 + $0x3b0] sm:$0xff]
      %v1348 = vld [vmem:[#allocation2 + $0x3b8] sm:$0xff]
      %v1349 = vld [vmem:[#allocation2 + $0x3c0] sm:$0xff]
      %v1350 = vld [vmem:[#allocation2 + $0x3c8] sm:$0xff]
      %v1351 = vld [vmem:[#allocation2 + $0x3d0] sm:$0xff]
      %v1352 = vld [vmem:[#allocation2 + $0x3d8] sm:$0xff]
      %v1353 = vld [vmem:[#allocation2 + $0x3e0] sm:$0xff]
      %v1354 = vld [vmem:[#allocation2 + $0x3e8] sm:$0xff]
      %v1355 = vld [vmem:[#allocation2 + $0x3f0] sm:$0xff]
      %v1356 = vld [vmem:[#allocation2 + $0x3f8] sm:$0xff]
      %v1357 = vld [vmem:[%s2] sm:$0x3]
      %v1359 = vlaneseq
      %v1360 = vshrl.u32 %v1359, 7
      %v1361 = vsub.s32 0, %v1360
      %v1362 = vrot.slane %v1357, %v1361
      %v1363 = vlaneseq
      %v1364 = vshrl.u32 %v1363, 7
      %v1365 = vsub.s32 1, %v1364
      %v1366 = vrot.slane %v1357, %v1365
      %v1369 = vadd.f32 %v1229, %v1362
      %v1370 = vadd.f32 %v1230, %v1366
      %v1371 = vadd.f32 %v1231, %v1362
      %v1372 = vadd.f32 %v1232, %v1366
      %v1373 = vadd.f32 %v1233, %v1362
      %v1374 = vadd.f32 %v1234, %v1366
      %v1375 = vadd.f32 %v1235, %v1362
      %v1376 = vadd.f32 %v1236, %v1366
      %v1377 = vadd.f32 %v1237, %v1362
      %v1378 = vadd.f32 %v1238, %v1366
      %v1379 = vadd.f32 %v1239, %v1362
      %v1380 = vadd.f32 %v1240, %v1366
      %v1381 = vadd.f32 %v1241, %v1362
      %v1382 = vadd.f32 %v1242, %v1366
      %v1383 = vadd.f32 %v1243, %v1362
      %v1384 = vadd.f32 %v1244, %v1366
      %v1385 = vadd.f32 %v1245, %v1362
      %v1386 = vadd.f32 %v1246, %v1366
      %v1387 = vadd.f32 %v1247, %v1362
      %v1388 = vadd.f32 %v1248, %v1366
      %v1389 = vadd.f32 %v1249, %v1362
      %v1390 = vadd.f32 %v1250, %v1366
      %v1391 = vadd.f32 %v1251, %v1362
      %v1392 = vadd.f32 %v1252, %v1366
      %v1393 = vadd.f32 %v1253, %v1362
      %v1394 = vadd.f32 %v1254, %v1366
      %v1395 = vadd.f32 %v1255, %v1362
      %v1396 = vadd.f32 %v1256, %v1366
      %v1397 = vadd.f32 %v1257, %v1362
      %v1398 = vadd.f32 %v1258, %v1366
      %v1399 = vadd.f32 %v1259, %v1362
      %v1400 = vadd.f32 %v1260, %v1366
      %v1401 = vadd.f32 %v1261, %v1362
      %v1402 = vadd.f32 %v1262, %v1366
      %v1403 = vadd.f32 %v1263, %v1362
      %v1404 = vadd.f32 %v1264, %v1366
      %v1405 = vadd.f32 %v1265, %v1362
      %v1406 = vadd.f32 %v1266, %v1366
      %v1407 = vadd.f32 %v1267, %v1362
      %v1408 = vadd.f32 %v1268, %v1366
      %v1409 = vadd.f32 %v1269, %v1362
      %v1410 = vadd.f32 %v1270, %v1366
      %v1411 = vadd.f32 %v1271, %v1362
      %v1412 = vadd.f32 %v1272, %v1366
      %v1413 = vadd.f32 %v1273, %v1362
      %v1414 = vadd.f32 %v1274, %v1366
      %v1415 = vadd.f32 %v1275, %v1362
      %v1416 = vadd.f32 %v1276, %v1366
      %v1417 = vadd.f32 %v1277, %v1362
      %v1418 = vadd.f32 %v1278, %v1366
      %v1419 = vadd.f32 %v1279, %v1362
      %v1420 = vadd.f32 %v1280, %v1366
      %v1421 = vadd.f32 %v1281, %v1362
      %v1422 = vadd.f32 %v1282, %v1366
      %v1423 = vadd.f32 %v1283, %v1362
      %v1424 = vadd.f32 %v1284, %v1366
      %v1425 = vadd.f32 %v1285, %v1362
      %v1426 = vadd.f32 %v1286, %v1366
      %v1427 = vadd.f32 %v1287, %v1362
      %v1428 = vadd.f32 %v1288, %v1366
      %v1429 = vadd.f32 %v1289, %v1362
      %v1430 = vadd.f32 %v1290, %v1366
      %v1431 = vadd.f32 %v1291, %v1362
      %v1432 = vadd.f32 %v1292, %v1366
      %v1433 = vadd.f32 %v1293, %v1362
      %v1434 = vadd.f32 %v1294, %v1366
      %v1435 = vadd.f32 %v1295, %v1362
      %v1436 = vadd.f32 %v1296, %v1366
      %v1437 = vadd.f32 %v1297, %v1362
      %v1438 = vadd.f32 %v1298, %v1366
      %v1439 = vadd.f32 %v1299, %v1362
      %v1440 = vadd.f32 %v1300, %v1366
      %v1441 = vadd.f32 %v1301, %v1362
      %v1442 = vadd.f32 %v1302, %v1366
      %v1443 = vadd.f32 %v1303, %v1362
      %v1444 = vadd.f32 %v1304, %v1366
      %v1445 = vadd.f32 %v1305, %v1362
      %v1446 = vadd.f32 %v1306, %v1366
      %v1447 = vadd.f32 %v1307, %v1362
      %v1448 = vadd.f32 %v1308, %v1366
      %v1449 = vadd.f32 %v1309, %v1362
      %v1450 = vadd.f32 %v1310, %v1366
      %v1451 = vadd.f32 %v1311, %v1362
      %v1452 = vadd.f32 %v1312, %v1366
      %v1453 = vadd.f32 %v1313, %v1362
      %v1454 = vadd.f32 %v1314, %v1366
      %v1455 = vadd.f32 %v1315, %v1362
      %v1456 = vadd.f32 %v1316, %v1366
      %v1457 = vadd.f32 %v1317, %v1362
      %v1458 = vadd.f32 %v1318, %v1366
      %v1459 = vadd.f32 %v1319, %v1362
      %v1460 = vadd.f32 %v1320, %v1366
      %v1461 = vadd.f32 %v1321, %v1362
      %v1462 = vadd.f32 %v1322, %v1366
      %v1463 = vadd.f32 %v1323, %v1362
      %v1464 = vadd.f32 %v1324, %v1366
      %v1465 = vadd.f32 %v1325, %v1362
      %v1466 = vadd.f32 %v1326, %v1366
      %v1467 = vadd.f32 %v1327, %v1362
      %v1468 = vadd.f32 %v1328, %v1366
      %v1469 = vadd.f32 %v1329, %v1362
      %v1470 = vadd.f32 %v1330, %v1366
      %v1471 = vadd.f32 %v1331, %v1362
      %v1472 = vadd.f32 %v1332, %v1366
      %v1473 = vadd.f32 %v1333, %v1362
      %v1474 = vadd.f32 %v1334, %v1366
      %v1475 = vadd.f32 %v1335, %v1362
      %v1476 = vadd.f32 %v1336, %v1366
      %v1477 = vadd.f32 %v1337, %v1362
      %v1478 = vadd.f32 %v1338, %v1366
      %v1479 = vadd.f32 %v1339, %v1362
      %v1480 = vadd.f32 %v1340, %v1366
      %v1481 = vadd.f32 %v1341, %v1362
      %v1482 = vadd.f32 %v1342, %v1366
      %v1483 = vadd.f32 %v1343, %v1362
      %v1484 = vadd.f32 %v1344, %v1366
      %v1485 = vadd.f32 %v1345, %v1362
      %v1486 = vadd.f32 %v1346, %v1366
      %v1487 = vadd.f32 %v1347, %v1362
      %v1488 = vadd.f32 %v1348, %v1366
      %v1489 = vadd.f32 %v1349, %v1362
      %v1490 = vadd.f32 %v1350, %v1366
      %v1491 = vadd.f32 %v1351, %v1362
      %v1492 = vadd.f32 %v1352, %v1366
      %v1493 = vadd.f32 %v1353, %v1362
      %v1494 = vadd.f32 %v1354, %v1366
      %v1495 = vadd.f32 %v1355, %v1362
      %v1496 = vadd.f32 %v1356, %v1366
      %v1497 = vsub.f32 0.0, %v1369
      %v1498 = vsub.f32 0.0, %v1370
      %v1499 = vsub.f32 0.0, %v1371
      %v1500 = vsub.f32 0.0, %v1372
      %v1501 = vsub.f32 0.0, %v1373
      %v1502 = vsub.f32 0.0, %v1374
      %v1503 = vsub.f32 0.0, %v1375
      %v1504 = vsub.f32 0.0, %v1376
      %v1505 = vsub.f32 0.0, %v1377
      %v1506 = vsub.f32 0.0, %v1378
      %v1507 = vsub.f32 0.0, %v1379
      %v1508 = vsub.f32 0.0, %v1380
      %v1509 = vsub.f32 0.0, %v1381
      %v1510 = vsub.f32 0.0, %v1382
      %v1511 = vsub.f32 0.0, %v1383
      %v1512 = vsub.f32 0.0, %v1384
      %v1513 = vsub.f32 0.0, %v1385
      %v1514 = vsub.f32 0.0, %v1386
      %v1515 = vsub.f32 0.0, %v1387
      %v1516 = vsub.f32 0.0, %v1388
      %v1517 = vsub.f32 0.0, %v1389
      %v1518 = vsub.f32 0.0, %v1390
      %v1519 = vsub.f32 0.0, %v1391
      %v1520 = vsub.f32 0.0, %v1392
      %v1521 = vsub.f32 0.0, %v1393
      %v1522 = vsub.f32 0.0, %v1394
      %v1523 = vsub.f32 0.0, %v1395
      %v1524 = vsub.f32 0.0, %v1396
      %v1525 = vsub.f32 0.0, %v1397
      %v1526 = vsub.f32 0.0, %v1398
      %v1527 = vsub.f32 0.0, %v1399
      %v1528 = vsub.f32 0.0, %v1400
      %v1529 = vsub.f32 0.0, %v1401
      %v1530 = vsub.f32 0.0, %v1402
      %v1531 = vsub.f32 0.0, %v1403
      %v1532 = vsub.f32 0.0, %v1404
      %v1533 = vsub.f32 0.0, %v1405
      %v1534 = vsub.f32 0.0, %v1406
      %v1535 = vsub.f32 0.0, %v1407
      %v1536 = vsub.f32 0.0, %v1408
      %v1537 = vsub.f32 0.0, %v1409
      %v1538 = vsub.f32 0.0, %v1410
      %v1539 = vsub.f32 0.0, %v1411
      %v1540 = vsub.f32 0.0, %v1412
      %v1541 = vsub.f32 0.0, %v1413
      %v1542 = vsub.f32 0.0, %v1414
      %v1543 = vsub.f32 0.0, %v1415
      %v1544 = vsub.f32 0.0, %v1416
      %v1545 = vsub.f32 0.0, %v1417
      %v1546 = vsub.f32 0.0, %v1418
      %v1547 = vsub.f32 0.0, %v1419
      %v1548 = vsub.f32 0.0, %v1420
      %v1549 = vsub.f32 0.0, %v1421
      %v1550 = vsub.f32 0.0, %v1422
      %v1551 = vsub.f32 0.0, %v1423
      %v1552 = vsub.f32 0.0, %v1424
      %v1553 = vsub.f32 0.0, %v1425
      %v1554 = vsub.f32 0.0, %v1426
      %v1555 = vsub.f32 0.0, %v1427
      %v1556 = vsub.f32 0.0, %v1428
      %v1557 = vsub.f32 0.0, %v1429
      %v1558 = vsub.f32 0.0, %v1430
      %v1559 = vsub.f32 0.0, %v1431
      %v1560 = vsub.f32 0.0, %v1432
      %v1561 = vsub.f32 0.0, %v1433
      %v1562 = vsub.f32 0.0, %v1434
      %v1563 = vsub.f32 0.0, %v1435
      %v1564 = vsub.f32 0.0, %v1436
      %v1565 = vsub.f32 0.0, %v1437
      %v1566 = vsub.f32 0.0, %v1438
      %v1567 = vsub.f32 0.0, %v1439
      %v1568 = vsub.f32 0.0, %v1440
      %v1569 = vsub.f32 0.0, %v1441
      %v1570 = vsub.f32 0.0, %v1442
      %v1571 = vsub.f32 0.0, %v1443
      %v1572 = vsub.f32 0.0, %v1444
      %v1573 = vsub.f32 0.0, %v1445
      %v1574 = vsub.f32 0.0, %v1446
      %v1575 = vsub.f32 0.0, %v1447
      %v1576 = vsub.f32 0.0, %v1448
      %v1577 = vsub.f32 0.0, %v1449
      %v1578 = vsub.f32 0.0, %v1450
      %v1579 = vsub.f32 0.0, %v1451
      %v1580 = vsub.f32 0.0, %v1452
      %v1581 = vsub.f32 0.0, %v1453
      %v1582 = vsub.f32 0.0, %v1454
      %v1583 = vsub.f32 0.0, %v1455
      %v1584 = vsub.f32 0.0, %v1456
      %v1585 = vsub.f32 0.0, %v1457
      %v1586 = vsub.f32 0.0, %v1458
      %v1587 = vsub.f32 0.0, %v1459
      %v1588 = vsub.f32 0.0, %v1460
      %v1589 = vsub.f32 0.0, %v1461
      %v1590 = vsub.f32 0.0, %v1462
      %v1591 = vsub.f32 0.0, %v1463
      %v1592 = vsub.f32 0.0, %v1464
      %v1593 = vsub.f32 0.0, %v1465
      %v1594 = vsub.f32 0.0, %v1466
      %v1595 = vsub.f32 0.0, %v1467
      %v1596 = vsub.f32 0.0, %v1468
      %v1597 = vsub.f32 0.0, %v1469
      %v1598 = vsub.f32 0.0, %v1470
      %v1599 = vsub.f32 0.0, %v1471
      %v1600 = vsub.f32 0.0, %v1472
      %v1601 = vsub.f32 0.0, %v1473
      %v1602 = vsub.f32 0.0, %v1474
      %v1603 = vsub.f32 0.0, %v1475
      %v1604 = vsub.f32 0.0, %v1476
      %v1605 = vsub.f32 0.0, %v1477
      %v1606 = vsub.f32 0.0, %v1478
      %v1607 = vsub.f32 0.0, %v1479
      %v1608 = vsub.f32 0.0, %v1480
      %v1609 = vsub.f32 0.0, %v1481
      %v1610 = vsub.f32 0.0, %v1482
      %v1611 = vsub.f32 0.0, %v1483
      %v1612 = vsub.f32 0.0, %v1484
      %v1613 = vsub.f32 0.0, %v1485
      %v1614 = vsub.f32 0.0, %v1486
      %v1615 = vsub.f32 0.0, %v1487
      %v1616 = vsub.f32 0.0, %v1488
      %v1617 = vsub.f32 0.0, %v1489
      %v1618 = vsub.f32 0.0, %v1490
      %v1619 = vsub.f32 0.0, %v1491
      %v1620 = vsub.f32 0.0, %v1492
      %v1621 = vsub.f32 0.0, %v1493
      %v1622 = vsub.f32 0.0, %v1494
      %v1623 = vsub.f32 0.0, %v1495
      %v1624 = vsub.f32 0.0, %v1496
      %v1625 = vmul.f32 %v1497, 1.442695
      %v1626 = vpow.pop %v1625
      %v1627 = vmul.f32 %v1498, 1.442695
      %v1628 = vpow.pop %v1627
      %v1629 = vmul.f32 %v1499, 1.442695
      %v1630 = vpow.pop %v1629
      %v1631 = vmul.f32 %v1500, 1.442695
      %v1632 = vpow.pop %v1631
      %v1633 = vmul.f32 %v1501, 1.442695
      %v1634 = vpow.pop %v1633
      %v1635 = vmul.f32 %v1502, 1.442695
      %v1636 = vpow.pop %v1635
      %v1637 = vmul.f32 %v1503, 1.442695
      %v1638 = vpow.pop %v1637
      %v1639 = vmul.f32 %v1504, 1.442695
      %v1640 = vpow.pop %v1639
      %v1641 = vmul.f32 %v1505, 1.442695
      %v1642 = vpow.pop %v1641
      %v1643 = vmul.f32 %v1506, 1.442695
      %v1644 = vpow.pop %v1643
      %v1645 = vmul.f32 %v1507, 1.442695
      %v1646 = vpow.pop %v1645
      %v1647 = vmul.f32 %v1508, 1.442695
      %v1648 = vpow.pop %v1647
      %v1649 = vmul.f32 %v1509, 1.442695
      %v1650 = vpow.pop %v1649
      %v1651 = vmul.f32 %v1510, 1.442695
      %v1652 = vpow.pop %v1651
      %v1653 = vmul.f32 %v1511, 1.442695
      %v1654 = vpow.pop %v1653
      %v1655 = vmul.f32 %v1512, 1.442695
      %v1656 = vpow.pop %v1655
      %v1657 = vmul.f32 %v1513, 1.442695
      %v1658 = vpow.pop %v1657
      %v1659 = vmul.f32 %v1514, 1.442695
      %v1660 = vpow.pop %v1659
      %v1661 = vmul.f32 %v1515, 1.442695
      %v1662 = vpow.pop %v1661
      %v1663 = vmul.f32 %v1516, 1.442695
      %v1664 = vpow.pop %v1663
      %v1665 = vmul.f32 %v1517, 1.442695
      %v1666 = vpow.pop %v1665
      %v1667 = vmul.f32 %v1518, 1.442695
      %v1668 = vpow.pop %v1667
      %v1669 = vmul.f32 %v1519, 1.442695
      %v1670 = vpow.pop %v1669
      %v1671 = vmul.f32 %v1520, 1.442695
      %v1672 = vpow.pop %v1671
      %v1673 = vmul.f32 %v1521, 1.442695
      %v1674 = vpow.pop %v1673
      %v1675 = vmul.f32 %v1522, 1.442695
      %v1676 = vpow.pop %v1675
      %v1677 = vmul.f32 %v1523, 1.442695
      %v1678 = vpow.pop %v1677
      %v1679 = vmul.f32 %v1524, 1.442695
      %v1680 = vpow.pop %v1679
      %v1681 = vmul.f32 %v1525, 1.442695
      %v1682 = vpow.pop %v1681
      %v1683 = vmul.f32 %v1526, 1.442695
      %v1684 = vpow.pop %v1683
      %v1685 = vmul.f32 %v1527, 1.442695
      %v1686 = vpow.pop %v1685
      %v1687 = vmul.f32 %v1528, 1.442695
      %v1688 = vpow.pop %v1687
      %v1689 = vmul.f32 %v1529, 1.442695
      %v1690 = vpow.pop %v1689
      %v1691 = vmul.f32 %v1530, 1.442695
      %v1692 = vpow.pop %v1691
      %v1693 = vmul.f32 %v1531, 1.442695
      %v1694 = vpow.pop %v1693
      %v1695 = vmul.f32 %v1532, 1.442695
      %v1696 = vpow.pop %v1695
      %v1697 = vmul.f32 %v1533, 1.442695
      %v1698 = vpow.pop %v1697
      %v1699 = vmul.f32 %v1534, 1.442695
      %v1700 = vpow.pop %v1699
      %v1701 = vmul.f32 %v1535, 1.442695
      %v1702 = vpow.pop %v1701
      %v1703 = vmul.f32 %v1536, 1.442695
      %v1704 = vpow.pop %v1703
      %v1705 = vmul.f32 %v1537, 1.442695
      %v1706 = vpow.pop %v1705
      %v1707 = vmul.f32 %v1538, 1.442695
      %v1708 = vpow.pop %v1707
      %v1709 = vmul.f32 %v1539, 1.442695
      %v1710 = vpow.pop %v1709
      %v1711 = vmul.f32 %v1540, 1.442695
      %v1712 = vpow.pop %v1711
      %v1713 = vmul.f32 %v1541, 1.442695
      %v1714 = vpow.pop %v1713
      %v1715 = vmul.f32 %v1542, 1.442695
      %v1716 = vpow.pop %v1715
      %v1717 = vmul.f32 %v1543, 1.442695
      %v1718 = vpow.pop %v1717
      %v1719 = vmul.f32 %v1544, 1.442695
      %v1720 = vpow.pop %v1719
      %v1721 = vmul.f32 %v1545, 1.442695
      %v1722 = vpow.pop %v1721
      %v1723 = vmul.f32 %v1546, 1.442695
      %v1724 = vpow.pop %v1723
      %v1725 = vmul.f32 %v1547, 1.442695
      %v1726 = vpow.pop %v1725
      %v1727 = vmul.f32 %v1548, 1.442695
      %v1728 = vpow.pop %v1727
      %v1729 = vmul.f32 %v1549, 1.442695
      %v1730 = vpow.pop %v1729
      %v1731 = vmul.f32 %v1550, 1.442695
      %v1732 = vpow.pop %v1731
      %v1733 = vmul.f32 %v1551, 1.442695
      %v1734 = vpow.pop %v1733
      %v1735 = vmul.f32 %v1552, 1.442695
      %v1736 = vpow.pop %v1735
      %v1737 = vmul.f32 %v1553, 1.442695
      %v1738 = vpow.pop %v1737
      %v1739 = vmul.f32 %v1554, 1.442695
      %v1740 = vpow.pop %v1739
      %v1741 = vmul.f32 %v1555, 1.442695
      %v1742 = vpow.pop %v1741
      %v1743 = vmul.f32 %v1556, 1.442695
      %v1744 = vpow.pop %v1743
      %v1745 = vmul.f32 %v1557, 1.442695
      %v1746 = vpow.pop %v1745
      %v1747 = vmul.f32 %v1558, 1.442695
      %v1748 = vpow.pop %v1747
      %v1749 = vmul.f32 %v1559, 1.442695
      %v1750 = vpow.pop %v1749
      %v1751 = vmul.f32 %v1560, 1.442695
      %v1752 = vpow.pop %v1751
      %v1753 = vmul.f32 %v1561, 1.442695
      %v1754 = vpow.pop %v1753
      %v1755 = vmul.f32 %v1562, 1.442695
      %v1756 = vpow.pop %v1755
      %v1757 = vmul.f32 %v1563, 1.442695
      %v1758 = vpow.pop %v1757
      %v1759 = vmul.f32 %v1564, 1.442695
      %v1760 = vpow.pop %v1759
      %v1761 = vmul.f32 %v1565, 1.442695
      %v1762 = vpow.pop %v1761
      %v1763 = vmul.f32 %v1566, 1.442695
      %v1764 = vpow.pop %v1763
      %v1765 = vmul.f32 %v1567, 1.442695
      %v1766 = vpow.pop %v1765
      %v1767 = vmul.f32 %v1568, 1.442695
      %v1768 = vpow.pop %v1767
      %v1769 = vmul.f32 %v1569, 1.442695
      %v1770 = vpow.pop %v1769
      %v1771 = vmul.f32 %v1570, 1.442695
      %v1772 = vpow.pop %v1771
      %v1773 = vmul.f32 %v1571, 1.442695
      %v1774 = vpow.pop %v1773
      %v1775 = vmul.f32 %v1572, 1.442695
      %v1776 = vpow.pop %v1775
      %v1777 = vmul.f32 %v1573, 1.442695
      %v1778 = vpow.pop %v1777
      %v1779 = vmul.f32 %v1574, 1.442695
      %v1780 = vpow.pop %v1779
      %v1781 = vmul.f32 %v1575, 1.442695
      %v1782 = vpow.pop %v1781
      %v1783 = vmul.f32 %v1576, 1.442695
      %v1784 = vpow.pop %v1783
      %v1785 = vmul.f32 %v1577, 1.442695
      %v1786 = vpow.pop %v1785
      %v1787 = vmul.f32 %v1578, 1.442695
      %v1788 = vpow.pop %v1787
      %v1789 = vmul.f32 %v1579, 1.442695
      %v1790 = vpow.pop %v1789
      %v1791 = vmul.f32 %v1580, 1.442695
      %v1792 = vpow.pop %v1791
      %v1793 = vmul.f32 %v1581, 1.442695
      %v1794 = vpow.pop %v1793
      %v1795 = vmul.f32 %v1582, 1.442695
      %v1796 = vpow.pop %v1795
      %v1797 = vmul.f32 %v1583, 1.442695
      %v1798 = vpow.pop %v1797
      %v1799 = vmul.f32 %v1584, 1.442695
      %v1800 = vpow.pop %v1799
      %v1801 = vmul.f32 %v1585, 1.442695
      %v1802 = vpow.pop %v1801
      %v1803 = vmul.f32 %v1586, 1.442695
      %v1804 = vpow.pop %v1803
      %v1805 = vmul.f32 %v1587, 1.442695
      %v1806 = vpow.pop %v1805
      %v1807 = vmul.f32 %v1588, 1.442695
      %v1808 = vpow.pop %v1807
      %v1809 = vmul.f32 %v1589, 1.442695
      %v1810 = vpow.pop %v1809
      %v1811 = vmul.f32 %v1590, 1.442695
      %v1812 = vpow.pop %v1811
      %v1813 = vmul.f32 %v1591, 1.442695
      %v1814 = vpow.pop %v1813
      %v1815 = vmul.f32 %v1592, 1.442695
      %v1816 = vpow.pop %v1815
      %v1817 = vmul.f32 %v1593, 1.442695
      %v1818 = vpow.pop %v1817
      %v1819 = vmul.f32 %v1594, 1.442695
      %v1820 = vpow.pop %v1819
      %v1821 = vmul.f32 %v1595, 1.442695
      %v1822 = vpow.pop %v1821
      %v1823 = vmul.f32 %v1596, 1.442695
      %v1824 = vpow.pop %v1823
      %v1825 = vmul.f32 %v1597, 1.442695
      %v1826 = vpow.pop %v1825
      %v1827 = vmul.f32 %v1598, 1.442695
      %v1828 = vpow.pop %v1827
      %v1829 = vmul.f32 %v1599, 1.442695
      %v1830 = vpow.pop %v1829
      %v1831 = vmul.f32 %v1600, 1.442695
      %v1832 = vpow.pop %v1831
      %v1833 = vmul.f32 %v1601, 1.442695
      %v1834 = vpow.pop %v1833
      %v1835 = vmul.f32 %v1602, 1.442695
      %v1836 = vpow.pop %v1835
      %v1837 = vmul.f32 %v1603, 1.442695
      %v1838 = vpow.pop %v1837
      %v1839 = vmul.f32 %v1604, 1.442695
      %v1840 = vpow.pop %v1839
      %v1841 = vmul.f32 %v1605, 1.442695
      %v1842 = vpow.pop %v1841
      %v1843 = vmul.f32 %v1606, 1.442695
      %v1844 = vpow.pop %v1843
      %v1845 = vmul.f32 %v1607, 1.442695
      %v1846 = vpow.pop %v1845
      %v1847 = vmul.f32 %v1608, 1.442695
      %v1848 = vpow.pop %v1847
      %v1849 = vmul.f32 %v1609, 1.442695
      %v1850 = vpow.pop %v1849
      %v1851 = vmul.f32 %v1610, 1.442695
      %v1852 = vpow.pop %v1851
      %v1853 = vmul.f32 %v1611, 1.442695
      %v1854 = vpow.pop %v1853
      %v1855 = vmul.f32 %v1612, 1.442695
      %v1856 = vpow.pop %v1855
      %v1857 = vmul.f32 %v1613, 1.442695
      %v1858 = vpow.pop %v1857
      %v1859 = vmul.f32 %v1614, 1.442695
      %v1860 = vpow.pop %v1859
      %v1861 = vmul.f32 %v1615, 1.442695
      %v1862 = vpow.pop %v1861
      %v1863 = vmul.f32 %v1616, 1.442695
      %v1864 = vpow.pop %v1863
      %v1865 = vmul.f32 %v1617, 1.442695
      %v1866 = vpow.pop %v1865
      %v1867 = vmul.f32 %v1618, 1.442695
      %v1868 = vpow.pop %v1867
      %v1869 = vmul.f32 %v1619, 1.442695
      %v1870 = vpow.pop %v1869
      %v1871 = vmul.f32 %v1620, 1.442695
      %v1872 = vpow.pop %v1871
      %v1873 = vmul.f32 %v1621, 1.442695
      %v1874 = vpow.pop %v1873
      %v1875 = vmul.f32 %v1622, 1.442695
      %v1876 = vpow.pop %v1875
      %v1877 = vmul.f32 %v1623, 1.442695
      %v1878 = vpow.pop %v1877
      %v1879 = vmul.f32 %v1624, 1.442695
      %v1880 = vpow.pop %v1879
      %v1881 = vadd.f32 %v1626, 1.0
      %v1882 = vadd.f32 %v1628, 1.0
      %v1883 = vadd.f32 %v1630, 1.0
      %v1884 = vadd.f32 %v1632, 1.0
      %v1885 = vadd.f32 %v1634, 1.0
      %v1886 = vadd.f32 %v1636, 1.0
      %v1887 = vadd.f32 %v1638, 1.0
      %v1888 = vadd.f32 %v1640, 1.0
      %v1889 = vadd.f32 %v1642, 1.0
      %v1890 = vadd.f32 %v1644, 1.0
      %v1891 = vadd.f32 %v1646, 1.0
      %v1892 = vadd.f32 %v1648, 1.0
      %v1893 = vadd.f32 %v1650, 1.0
      %v1894 = vadd.f32 %v1652, 1.0
      %v1895 = vadd.f32 %v1654, 1.0
      %v1896 = vadd.f32 %v1656, 1.0
      %v1897 = vadd.f32 %v1658, 1.0
      %v1898 = vadd.f32 %v1660, 1.0
      %v1899 = vadd.f32 %v1662, 1.0
      %v1900 = vadd.f32 %v1664, 1.0
      %v1901 = vadd.f32 %v1666, 1.0
      %v1902 = vadd.f32 %v1668, 1.0
      %v1903 = vadd.f32 %v1670, 1.0
      %v1904 = vadd.f32 %v1672, 1.0
      %v1905 = vadd.f32 %v1674, 1.0
      %v1906 = vadd.f32 %v1676, 1.0
      %v1907 = vadd.f32 %v1678, 1.0
      %v1908 = vadd.f32 %v1680, 1.0
      %v1909 = vadd.f32 %v1682, 1.0
      %v1910 = vadd.f32 %v1684, 1.0
      %v1911 = vadd.f32 %v1686, 1.0
      %v1912 = vadd.f32 %v1688, 1.0
      %v1913 = vadd.f32 %v1690, 1.0
      %v1914 = vadd.f32 %v1692, 1.0
      %v1915 = vadd.f32 %v1694, 1.0
      %v1916 = vadd.f32 %v1696, 1.0
      %v1917 = vadd.f32 %v1698, 1.0
      %v1918 = vadd.f32 %v1700, 1.0
      %v1919 = vadd.f32 %v1702, 1.0
      %v1920 = vadd.f32 %v1704, 1.0
      %v1921 = vadd.f32 %v1706, 1.0
      %v1922 = vadd.f32 %v1708, 1.0
      %v1923 = vadd.f32 %v1710, 1.0
      %v1924 = vadd.f32 %v1712, 1.0
      %v1925 = vadd.f32 %v1714, 1.0
      %v1926 = vadd.f32 %v1716, 1.0
      %v1927 = vadd.f32 %v1718, 1.0
      %v1928 = vadd.f32 %v1720, 1.0
      %v1929 = vadd.f32 %v1722, 1.0
      %v1930 = vadd.f32 %v1724, 1.0
      %v1931 = vadd.f32 %v1726, 1.0
      %v1932 = vadd.f32 %v1728, 1.0
      %v1933 = vadd.f32 %v1730, 1.0
      %v1934 = vadd.f32 %v1732, 1.0
      %v1935 = vadd.f32 %v1734, 1.0
      %v1936 = vadd.f32 %v1736, 1.0
      %v1937 = vadd.f32 %v1738, 1.0
      %v1938 = vadd.f32 %v1740, 1.0
      %v1939 = vadd.f32 %v1742, 1.0
      %v1940 = vadd.f32 %v1744, 1.0
      %v1941 = vadd.f32 %v1746, 1.0
      %v1942 = vadd.f32 %v1748, 1.0
      %v1943 = vadd.f32 %v1750, 1.0
      %v1944 = vadd.f32 %v1752, 1.0
      %v1945 = vadd.f32 %v1754, 1.0
      %v1946 = vadd.f32 %v1756, 1.0
      %v1947 = vadd.f32 %v1758, 1.0
      %v1948 = vadd.f32 %v1760, 1.0
      %v1949 = vadd.f32 %v1762, 1.0
      %v1950 = vadd.f32 %v1764, 1.0
      %v1951 = vadd.f32 %v1766, 1.0
      %v1952 = vadd.f32 %v1768, 1.0
      %v1953 = vadd.f32 %v1770, 1.0
      %v1954 = vadd.f32 %v1772, 1.0
      %v1955 = vadd.f32 %v1774, 1.0
      %v1956 = vadd.f32 %v1776, 1.0
      %v1957 = vadd.f32 %v1778, 1.0
      %v1958 = vadd.f32 %v1780, 1.0
      %v1959 = vadd.f32 %v1782, 1.0
      %v1960 = vadd.f32 %v1784, 1.0
      %v1961 = vadd.f32 %v1786, 1.0
      %v1962 = vadd.f32 %v1788, 1.0
      %v1963 = vadd.f32 %v1790, 1.0
      %v1964 = vadd.f32 %v1792, 1.0
      %v1965 = vadd.f32 %v1794, 1.0
      %v1966 = vadd.f32 %v1796, 1.0
      %v1967 = vadd.f32 %v1798, 1.0
      %v1968 = vadd.f32 %v1800, 1.0
      %v1969 = vadd.f32 %v1802, 1.0
      %v1970 = vadd.f32 %v1804, 1.0
      %v1971 = vadd.f32 %v1806, 1.0
      %v1972 = vadd.f32 %v1808, 1.0
      %v1973 = vadd.f32 %v1810, 1.0
      %v1974 = vadd.f32 %v1812, 1.0
      %v1975 = vadd.f32 %v1814, 1.0
      %v1976 = vadd.f32 %v1816, 1.0
      %v1977 = vadd.f32 %v1818, 1.0
      %v1978 = vadd.f32 %v1820, 1.0
      %v1979 = vadd.f32 %v1822, 1.0
      %v1980 = vadd.f32 %v1824, 1.0
      %v1981 = vadd.f32 %v1826, 1.0
      %v1982 = vadd.f32 %v1828, 1.0
      %v1983 = vadd.f32 %v1830, 1.0
      %v1984 = vadd.f32 %v1832, 1.0
      %v1985 = vadd.f32 %v1834, 1.0
      %v1986 = vadd.f32 %v1836, 1.0
      %v1987 = vadd.f32 %v1838, 1.0
      %v1988 = vadd.f32 %v1840, 1.0
      %v1989 = vadd.f32 %v1842, 1.0
      %v1990 = vadd.f32 %v1844, 1.0
      %v1991 = vadd.f32 %v1846, 1.0
      %v1992 = vadd.f32 %v1848, 1.0
      %v1993 = vadd.f32 %v1850, 1.0
      %v1994 = vadd.f32 %v1852, 1.0
      %v1995 = vadd.f32 %v1854, 1.0
      %v1996 = vadd.f32 %v1856, 1.0
      %v1997 = vadd.f32 %v1858, 1.0
      %v1998 = vadd.f32 %v1860, 1.0
      %v1999 = vadd.f32 %v1862, 1.0
      %v2000 = vadd.f32 %v1864, 1.0
      %v2001 = vadd.f32 %v1866, 1.0
      %v2002 = vadd.f32 %v1868, 1.0
      %v2003 = vadd.f32 %v1870, 1.0
      %v2004 = vadd.f32 %v1872, 1.0
      %v2005 = vadd.f32 %v1874, 1.0
      %v2006 = vadd.f32 %v1876, 1.0
      %v2007 = vadd.f32 %v1878, 1.0
      %v2008 = vadd.f32 %v1880, 1.0
      %v2009 = vrcp.pop %v1881
      %v2010 = vrcp.pop %v1882
      %v2011 = vrcp.pop %v1883
      %v2012 = vrcp.pop %v1884
      %v2013 = vrcp.pop %v1885
      %v2014 = vrcp.pop %v1886
      %v2015 = vrcp.pop %v1887
      %v2016 = vrcp.pop %v1888
      %v2017 = vrcp.pop %v1889
      %v2018 = vrcp.pop %v1890
      %v2019 = vrcp.pop %v1891
      %v2020 = vrcp.pop %v1892
      %v2021 = vrcp.pop %v1893
      %v2022 = vrcp.pop %v1894
      %v2023 = vrcp.pop %v1895
      %v2024 = vrcp.pop %v1896
      %v2025 = vrcp.pop %v1897
      %v2026 = vrcp.pop %v1898
      %v2027 = vrcp.pop %v1899
      %v2028 = vrcp.pop %v1900
      %v2029 = vrcp.pop %v1901
      %v2030 = vrcp.pop %v1902
      %v2031 = vrcp.pop %v1903
      %v2032 = vrcp.pop %v1904
      %v2033 = vrcp.pop %v1905
      %v2034 = vrcp.pop %v1906
      %v2035 = vrcp.pop %v1907
      %v2036 = vrcp.pop %v1908
      %v2037 = vrcp.pop %v1909
      %v2038 = vrcp.pop %v1910
      %v2039 = vrcp.pop %v1911
      %v2040 = vrcp.pop %v1912
      %v2041 = vrcp.pop %v1913
      %v2042 = vrcp.pop %v1914
      %v2043 = vrcp.pop %v1915
      %v2044 = vrcp.pop %v1916
      %v2045 = vrcp.pop %v1917
      %v2046 = vrcp.pop %v1918
      %v2047 = vrcp.pop %v1919
      %v2048 = vrcp.pop %v1920
      %v2049 = vrcp.pop %v1921
      %v2050 = vrcp.pop %v1922
      %v2051 = vrcp.pop %v1923
      %v2052 = vrcp.pop %v1924
      %v2053 = vrcp.pop %v1925
      %v2054 = vrcp.pop %v1926
      %v2055 = vrcp.pop %v1927
      %v2056 = vrcp.pop %v1928
      %v2057 = vrcp.pop %v1929
      %v2058 = vrcp.pop %v1930
      %v2059 = vrcp.pop %v1931
      %v2060 = vrcp.pop %v1932
      %v2061 = vrcp.pop %v1933
      %v2062 = vrcp.pop %v1934
      %v2063 = vrcp.pop %v1935
      %v2064 = vrcp.pop %v1936
      %v2065 = vrcp.pop %v1937
      %v2066 = vrcp.pop %v1938
      %v2067 = vrcp.pop %v1939
      %v2068 = vrcp.pop %v1940
      %v2069 = vrcp.pop %v1941
      %v2070 = vrcp.pop %v1942
      %v2071 = vrcp.pop %v1943
      %v2072 = vrcp.pop %v1944
      %v2073 = vrcp.pop %v1945
      %v2074 = vrcp.pop %v1946
      %v2075 = vrcp.pop %v1947
      %v2076 = vrcp.pop %v1948
      %v2077 = vrcp.pop %v1949
      %v2078 = vrcp.pop %v1950
      %v2079 = vrcp.pop %v1951
      %v2080 = vrcp.pop %v1952
      %v2081 = vrcp.pop %v1953
      %v2082 = vrcp.pop %v1954
      %v2083 = vrcp.pop %v1955
      %v2084 = vrcp.pop %v1956
      %v2085 = vrcp.pop %v1957
      %v2086 = vrcp.pop %v1958
      %v2087 = vrcp.pop %v1959
      %v2088 = vrcp.pop %v1960
      %v2089 = vrcp.pop %v1961
      %v2090 = vrcp.pop %v1962
      %v2091 = vrcp.pop %v1963
      %v2092 = vrcp.pop %v1964
      %v2093 = vrcp.pop %v1965
      %v2094 = vrcp.pop %v1966
      %v2095 = vrcp.pop %v1967
      %v2096 = vrcp.pop %v1968
      %v2097 = vrcp.pop %v1969
      %v2098 = vrcp.pop %v1970
      %v2099 = vrcp.pop %v1971
      %v2100 = vrcp.pop %v1972
      %v2101 = vrcp.pop %v1973
      %v2102 = vrcp.pop %v1974
      %v2103 = vrcp.pop %v1975
      %v2104 = vrcp.pop %v1976
      %v2105 = vrcp.pop %v1977
      %v2106 = vrcp.pop %v1978
      %v2107 = vrcp.pop %v1979
      %v2108 = vrcp.pop %v1980
      %v2109 = vrcp.pop %v1981
      %v2110 = vrcp.pop %v1982
      %v2111 = vrcp.pop %v1983
      %v2112 = vrcp.pop %v1984
      %v2113 = vrcp.pop %v1985
      %v2114 = vrcp.pop %v1986
      %v2115 = vrcp.pop %v1987
      %v2116 = vrcp.pop %v1988
      %v2117 = vrcp.pop %v1989
      %v2118 = vrcp.pop %v1990
      %v2119 = vrcp.pop %v1991
      %v2120 = vrcp.pop %v1992
      %v2121 = vrcp.pop %v1993
      %v2122 = vrcp.pop %v1994
      %v2123 = vrcp.pop %v1995
      %v2124 = vrcp.pop %v1996
      %v2125 = vrcp.pop %v1997
      %v2126 = vrcp.pop %v1998
      %v2127 = vrcp.pop %v1999
      %v2128 = vrcp.pop %v2000
      %v2129 = vrcp.pop %v2001
      %v2130 = vrcp.pop %v2002
      %v2131 = vrcp.pop %v2003
      %v2132 = vrcp.pop %v2004
      %v2133 = vrcp.pop %v2005
      %v2134 = vrcp.pop %v2006
      %v2135 = vrcp.pop %v2007
      %v2136 = vrcp.pop %v2008
      %v2137 = vmul.f32 %v1369, %v2009
      %v2138 = vmul.f32 %v1370, %v2010
      %v2139 = vmul.f32 %v1371, %v2011
      %v2140 = vmul.f32 %v1372, %v2012
      %v2141 = vmul.f32 %v1373, %v2013
      %v2142 = vmul.f32 %v1374, %v2014
      %v2143 = vmul.f32 %v1375, %v2015
      %v2144 = vmul.f32 %v1376, %v2016
      %v2145 = vmul.f32 %v1377, %v2017
      %v2146 = vmul.f32 %v1378, %v2018
      %v2147 = vmul.f32 %v1379, %v2019
      %v2148 = vmul.f32 %v1380, %v2020
      %v2149 = vmul.f32 %v1381, %v2021
      %v2150 = vmul.f32 %v1382, %v2022
      %v2151 = vmul.f32 %v1383, %v2023
      %v2152 = vmul.f32 %v1384, %v2024
      %v2153 = vmul.f32 %v1385, %v2025
      %v2154 = vmul.f32 %v1386, %v2026
      %v2155 = vmul.f32 %v1387, %v2027
      %v2156 = vmul.f32 %v1388, %v2028
      %v2157 = vmul.f32 %v1389, %v2029
      %v2158 = vmul.f32 %v1390, %v2030
      %v2159 = vmul.f32 %v1391, %v2031
      %v2160 = vmul.f32 %v1392, %v2032
      %v2161 = vmul.f32 %v1393, %v2033
      %v2162 = vmul.f32 %v1394, %v2034
      %v2163 = vmul.f32 %v1395, %v2035
      %v2164 = vmul.f32 %v1396, %v2036
      %v2165 = vmul.f32 %v1397, %v2037
      %v2166 = vmul.f32 %v1398, %v2038
      %v2167 = vmul.f32 %v1399, %v2039
      %v2168 = vmul.f32 %v1400, %v2040
      %v2169 = vmul.f32 %v1401, %v2041
      %v2170 = vmul.f32 %v1402, %v2042
      %v2171 = vmul.f32 %v1403, %v2043
      %v2172 = vmul.f32 %v1404, %v2044
      %v2173 = vmul.f32 %v1405, %v2045
      %v2174 = vmul.f32 %v1406, %v2046
      %v2175 = vmul.f32 %v1407, %v2047
      %v2176 = vmul.f32 %v1408, %v2048
      %v2177 = vmul.f32 %v1409, %v2049
      %v2178 = vmul.f32 %v1410, %v2050
      %v2179 = vmul.f32 %v1411, %v2051
      %v2180 = vmul.f32 %v1412, %v2052
      %v2181 = vmul.f32 %v1413, %v2053
      %v2182 = vmul.f32 %v1414, %v2054
      %v2183 = vmul.f32 %v1415, %v2055
      %v2184 = vmul.f32 %v1416, %v2056
      %v2185 = vmul.f32 %v1417, %v2057
      %v2186 = vmul.f32 %v1418, %v2058
      %v2187 = vmul.f32 %v1419, %v2059
      %v2188 = vmul.f32 %v1420, %v2060
      %v2189 = vmul.f32 %v1421, %v2061
      %v2190 = vmul.f32 %v1422, %v2062
      %v2191 = vmul.f32 %v1423, %v2063
      %v2192 = vmul.f32 %v1424, %v2064
      %v2193 = vmul.f32 %v1425, %v2065
      %v2194 = vmul.f32 %v1426, %v2066
      %v2195 = vmul.f32 %v1427, %v2067
      %v2196 = vmul.f32 %v1428, %v2068
      %v2197 = vmul.f32 %v1429, %v2069
      %v2198 = vmul.f32 %v1430, %v2070
      %v2199 = vmul.f32 %v1431, %v2071
      %v2200 = vmul.f32 %v1432, %v2072
      %v2201 = vmul.f32 %v1433, %v2073
      %v2202 = vmul.f32 %v1434, %v2074
      %v2203 = vmul.f32 %v1435, %v2075
      %v2204 = vmul.f32 %v1436, %v2076
      %v2205 = vmul.f32 %v1437, %v2077
      %v2206 = vmul.f32 %v1438, %v2078
      %v2207 = vmul.f32 %v1439, %v2079
      %v2208 = vmul.f32 %v1440, %v2080
      %v2209 = vmul.f32 %v1441, %v2081
      %v2210 = vmul.f32 %v1442, %v2082
      %v2211 = vmul.f32 %v1443, %v2083
      %v2212 = vmul.f32 %v1444, %v2084
      %v2213 = vmul.f32 %v1445, %v2085
      %v2214 = vmul.f32 %v1446, %v2086
      %v2215 = vmul.f32 %v1447, %v2087
      %v2216 = vmul.f32 %v1448, %v2088
      %v2217 = vmul.f32 %v1449, %v2089
      %v2218 = vmul.f32 %v1450, %v2090
      %v2219 = vmul.f32 %v1451, %v2091
      %v2220 = vmul.f32 %v1452, %v2092
      %v2221 = vmul.f32 %v1453, %v2093
      %v2222 = vmul.f32 %v1454, %v2094
      %v2223 = vmul.f32 %v1455, %v2095
      %v2224 = vmul.f32 %v1456, %v2096
      %v2225 = vmul.f32 %v1457, %v2097
      %v2226 = vmul.f32 %v1458, %v2098
      %v2227 = vmul.f32 %v1459, %v2099
      %v2228 = vmul.f32 %v1460, %v2100
      %v2229 = vmul.f32 %v1461, %v2101
      %v2230 = vmul.f32 %v1462, %v2102
      %v2231 = vmul.f32 %v1463, %v2103
      %v2232 = vmul.f32 %v1464, %v2104
      %v2233 = vmul.f32 %v1465, %v2105
      %v2234 = vmul.f32 %v1466, %v2106
      %v2235 = vmul.f32 %v1467, %v2107
      %v2236 = vmul.f32 %v1468, %v2108
      %v2237 = vmul.f32 %v1469, %v2109
      %v2238 = vmul.f32 %v1470, %v2110
      %v2239 = vmul.f32 %v1471, %v2111
      %v2240 = vmul.f32 %v1472, %v2112
      %v2241 = vmul.f32 %v1473, %v2113
      %v2242 = vmul.f32 %v1474, %v2114
      %v2243 = vmul.f32 %v1475, %v2115
      %v2244 = vmul.f32 %v1476, %v2116
      %v2245 = vmul.f32 %v1477, %v2117
      %v2246 = vmul.f32 %v1478, %v2118
      %v2247 = vmul.f32 %v1479, %v2119
      %v2248 = vmul.f32 %v1480, %v2120
      %v2249 = vmul.f32 %v1481, %v2121
      %v2250 = vmul.f32 %v1482, %v2122
      %v2251 = vmul.f32 %v1483, %v2123
      %v2252 = vmul.f32 %v1484, %v2124
      %v2253 = vmul.f32 %v1485, %v2125
      %v2254 = vmul.f32 %v1486, %v2126
      %v2255 = vmul.f32 %v1487, %v2127
      %v2256 = vmul.f32 %v1488, %v2128
      %v2257 = vmul.f32 %v1489, %v2129
      %v2258 = vmul.f32 %v1490, %v2130
      %v2259 = vmul.f32 %v1491, %v2131
      %v2260 = vmul.f32 %v1492, %v2132
      %v2261 = vmul.f32 %v1493, %v2133
      %v2262 = vmul.f32 %v1494, %v2134
      %v2263 = vmul.f32 %v1495, %v2135
      %v2264 = vmul.f32 %v1496, %v2136
      %v2265 = vpack.c.bf16 %v2139, %v2137
      %v2266 = vpack.c.bf16 %v2143, %v2141
      %v2267 = vpack.c.bf16 %v2147, %v2145
      %v2268 = vpack.c.bf16 %v2151, %v2149
      %v2269 = vpack.c.bf16 %v2155, %v2153
      %v2270 = vpack.c.bf16 %v2159, %v2157
      %v2271 = vpack.c.bf16 %v2163, %v2161
      %v2272 = vpack.c.bf16 %v2167, %v2165
      %v2273 = vpack.c.bf16 %v2171, %v2169
      %v2274 = vpack.c.bf16 %v2175, %v2173
      %v2275 = vpack.c.bf16 %v2179, %v2177
      %v2276 = vpack.c.bf16 %v2183, %v2181
      %v2277 = vpack.c.bf16 %v2187, %v2185
      %v2278 = vpack.c.bf16 %v2191, %v2189
      %v2279 = vpack.c.bf16 %v2195, %v2193
      %v2280 = vpack.c.bf16 %v2199, %v2197
      %v2281 = vpack.c.bf16 %v2203, %v2201
      %v2282 = vpack.c.bf16 %v2207, %v2205
      %v2283 = vpack.c.bf16 %v2211, %v2209
      %v2284 = vpack.c.bf16 %v2215, %v2213
      %v2285 = vpack.c.bf16 %v2219, %v2217
      %v2286 = vpack.c.bf16 %v2223, %v2221
      %v2287 = vpack.c.bf16 %v2227, %v2225
      %v2288 = vpack.c.bf16 %v2231, %v2229
      %v2289 = vpack.c.bf16 %v2235, %v2233
      %v2290 = vpack.c.bf16 %v2239, %v2237
      %v2291 = vpack.c.bf16 %v2243, %v2241
      %v2292 = vpack.c.bf16 %v2247, %v2245
      %v2293 = vpack.c.bf16 %v2251, %v2249
      %v2294 = vpack.c.bf16 %v2255, %v2253
      %v2295 = vpack.c.bf16 %v2259, %v2257
      %v2296 = vpack.c.bf16 %v2263, %v2261
      %v2329 = vunpack.c.l.b16 %v2265
      %v2330 = vunpack.c.h.b16 %v2265
      %v2331 = vunpack.c.l.b16 %v2266
      %v2332 = vunpack.c.h.b16 %v2266
      %v2333 = vunpack.c.l.b16 %v2267
      %v2334 = vunpack.c.h.b16 %v2267
      %v2335 = vunpack.c.l.b16 %v2268
      %v2336 = vunpack.c.h.b16 %v2268
      %v2337 = vunpack.c.l.b16 %v2269
      %v2338 = vunpack.c.h.b16 %v2269
      %v2339 = vunpack.c.l.b16 %v2270
      %v2340 = vunpack.c.h.b16 %v2270
      %v2341 = vunpack.c.l.b16 %v2271
      %v2342 = vunpack.c.h.b16 %v2271
      %v2343 = vunpack.c.l.b16 %v2272
      %v2344 = vunpack.c.h.b16 %v2272
      %v2345 = vunpack.c.l.b16 %v2273
      %v2346 = vunpack.c.h.b16 %v2273
      %v2347 = vunpack.c.l.b16 %v2274
      %v2348 = vunpack.c.h.b16 %v2274
      %v2349 = vunpack.c.l.b16 %v2275
      %v2350 = vunpack.c.h.b16 %v2275
      %v2351 = vunpack.c.l.b16 %v2276
      %v2352 = vunpack.c.h.b16 %v2276
      %v2353 = vunpack.c.l.b16 %v2277
      %v2354 = vunpack.c.h.b16 %v2277
      %v2355 = vunpack.c.l.b16 %v2278
      %v2356 = vunpack.c.h.b16 %v2278
      %v2357 = vunpack.c.l.b16 %v2279
      %v2358 = vunpack.c.h.b16 %v2279
      %v2359 = vunpack.c.l.b16 %v2280
      %v2360 = vunpack.c.h.b16 %v2280
      %v2361 = vunpack.c.l.b16 %v2281
      %v2362 = vunpack.c.h.b16 %v2281
      %v2363 = vunpack.c.l.b16 %v2282
      %v2364 = vunpack.c.h.b16 %v2282
      %v2365 = vunpack.c.l.b16 %v2283
      %v2366 = vunpack.c.h.b16 %v2283
      %v2367 = vunpack.c.l.b16 %v2284
      %v2368 = vunpack.c.h.b16 %v2284
      %v2369 = vunpack.c.l.b16 %v2285
      %v2370 = vunpack.c.h.b16 %v2285
      %v2371 = vunpack.c.l.b16 %v2286
      %v2372 = vunpack.c.h.b16 %v2286
      %v2373 = vunpack.c.l.b16 %v2287
      %v2374 = vunpack.c.h.b16 %v2287
      %v2375 = vunpack.c.l.b16 %v2288
      %v2376 = vunpack.c.h.b16 %v2288
      %v2377 = vunpack.c.l.b16 %v2289
      %v2378 = vunpack.c.h.b16 %v2289
      %v2379 = vunpack.c.l.b16 %v2290
      %v2380 = vunpack.c.h.b16 %v2290
      %v2381 = vunpack.c.l.b16 %v2291
      %v2382 = vunpack.c.h.b16 %v2291
      %v2383 = vunpack.c.l.b16 %v2292
      %v2384 = vunpack.c.h.b16 %v2292
      %v2385 = vunpack.c.l.b16 %v2293
      %v2386 = vunpack.c.h.b16 %v2293
      %v2387 = vunpack.c.l.b16 %v2294
      %v2388 = vunpack.c.h.b16 %v2294
      %v2389 = vunpack.c.l.b16 %v2295
      %v2390 = vunpack.c.h.b16 %v2295
      %v2391 = vunpack.c.l.b16 %v2296
      %v2392 = vunpack.c.h.b16 %v2296
      %v2393 = vpack.c.b16 %v2329, %v2329
      %v2394 = vpack.c.b16 %v2330, %v2330
      %v2395 = vpack.c.b16 %v2331, %v2331
      %v2396 = vpack.c.b16 %v2332, %v2332
      %v2397 = vpack.c.b16 %v2333, %v2333
      %v2398 = vpack.c.b16 %v2334, %v2334
      %v2399 = vpack.c.b16 %v2335, %v2335
      %v2400 = vpack.c.b16 %v2336, %v2336
      %v2401 = vpack.c.b16 %v2337, %v2337
      %v2402 = vpack.c.b16 %v2338, %v2338
      %v2403 = vpack.c.b16 %v2339, %v2339
      %v2404 = vpack.c.b16 %v2340, %v2340
      %v2405 = vpack.c.b16 %v2341, %v2341
      %v2406 = vpack.c.b16 %v2342, %v2342
      %v2407 = vpack.c.b16 %v2343, %v2343
      %v2408 = vpack.c.b16 %v2344, %v2344
      %v2409 = vpack.c.b16 %v2345, %v2345
      %v2410 = vpack.c.b16 %v2346, %v2346
      %v2411 = vpack.c.b16 %v2347, %v2347
      %v2412 = vpack.c.b16 %v2348, %v2348
      %v2413 = vpack.c.b16 %v2349, %v2349
      %v2414 = vpack.c.b16 %v2350, %v2350
      %v2415 = vpack.c.b16 %v2351, %v2351
      %v2416 = vpack.c.b16 %v2352, %v2352
      %v2417 = vpack.c.b16 %v2353, %v2353
      %v2418 = vpack.c.b16 %v2354, %v2354
      %v2419 = vpack.c.b16 %v2355, %v2355
      %v2420 = vpack.c.b16 %v2356, %v2356
      %v2421 = vpack.c.b16 %v2357, %v2357
      %v2422 = vpack.c.b16 %v2358, %v2358
      %v2423 = vpack.c.b16 %v2359, %v2359
      %v2424 = vpack.c.b16 %v2360, %v2360
      %v2425 = vpack.c.b16 %v2361, %v2361
      %v2426 = vpack.c.b16 %v2362, %v2362
      %v2427 = vpack.c.b16 %v2363, %v2363
      %v2428 = vpack.c.b16 %v2364, %v2364
      %v2429 = vpack.c.b16 %v2365, %v2365
      %v2430 = vpack.c.b16 %v2366, %v2366
      %v2431 = vpack.c.b16 %v2367, %v2367
      %v2432 = vpack.c.b16 %v2368, %v2368
      %v2433 = vpack.c.b16 %v2369, %v2369
      %v2434 = vpack.c.b16 %v2370, %v2370
      %v2435 = vpack.c.b16 %v2371, %v2371
      %v2436 = vpack.c.b16 %v2372, %v2372
      %v2437 = vpack.c.b16 %v2373, %v2373
      %v2438 = vpack.c.b16 %v2374, %v2374
      %v2439 = vpack.c.b16 %v2375, %v2375
      %v2440 = vpack.c.b16 %v2376, %v2376
      %v2441 = vpack.c.b16 %v2377, %v2377
      %v2442 = vpack.c.b16 %v2378, %v2378
      %v2443 = vpack.c.b16 %v2379, %v2379
      %v2444 = vpack.c.b16 %v2380, %v2380
      %v2445 = vpack.c.b16 %v2381, %v2381
      %v2446 = vpack.c.b16 %v2382, %v2382
      %v2447 = vpack.c.b16 %v2383, %v2383
      %v2448 = vpack.c.b16 %v2384, %v2384
      %v2449 = vpack.c.b16 %v2385, %v2385
      %v2450 = vpack.c.b16 %v2386, %v2386
      %v2451 = vpack.c.b16 %v2387, %v2387
      %v2452 = vpack.c.b16 %v2388, %v2388
      %v2453 = vpack.c.b16 %v2389, %v2389
      %v2454 = vpack.c.b16 %v2390, %v2390
      %v2455 = vpack.c.b16 %v2391, %v2391
      %v2456 = vpack.c.b16 %v2392, %v2392
      %2521 = vst [vmem:[#allocation3] sm:$0xf] %v2393
      %2522 = vst [vmem:[#allocation3 + $0x4] sm:$0xf] %v2394
      %2523 = vst [vmem:[#allocation3 + $0x8] sm:$0xf] %v2395
      %2524 = vst [vmem:[#allocation3 + $0xc] sm:$0xf] %v2396
      %2525 = vst [vmem:[#allocation3 + $0x10] sm:$0xf] %v2397
      %2526 = vst [vmem:[#allocation3 + $0x14] sm:$0xf] %v2398
      %2527 = vst [vmem:[#allocation3 + $0x18] sm:$0xf] %v2399
      %2528 = vst [vmem:[#allocation3 + $0x1c] sm:$0xf] %v2400
      %2529 = vst [vmem:[#allocation3 + $0x20] sm:$0xf] %v2401
      %2530 = vst [vmem:[#allocation3 + $0x24] sm:$0xf] %v2402
      %2531 = vst [vmem:[#allocation3 + $0x28] sm:$0xf] %v2403
      %2532 = vst [vmem:[#allocation3 + $0x2c] sm:$0xf] %v2404
      %2533 = vst [vmem:[#allocation3 + $0x30] sm:$0xf] %v2405
      %2534 = vst [vmem:[#allocation3 + $0x34] sm:$0xf] %v2406
      %2535 = vst [vmem:[#allocation3 + $0x38] sm:$0xf] %v2407
      %2536 = vst [vmem:[#allocation3 + $0x3c] sm:$0xf] %v2408
      %2537 = vst [vmem:[#allocation3 + $0x40] sm:$0xf] %v2409
      %2538 = vst [vmem:[#allocation3 + $0x44] sm:$0xf] %v2410
      %2539 = vst [vmem:[#allocation3 + $0x48] sm:$0xf] %v2411
      %2540 = vst [vmem:[#allocation3 + $0x4c] sm:$0xf] %v2412
      %2541 = vst [vmem:[#allocation3 + $0x50] sm:$0xf] %v2413
      %2542 = vst [vmem:[#allocation3 + $0x54] sm:$0xf] %v2414
      %2543 = vst [vmem:[#allocation3 + $0x58] sm:$0xf] %v2415
      %2544 = vst [vmem:[#allocation3 + $0x5c] sm:$0xf] %v2416
      %2545 = vst [vmem:[#allocation3 + $0x60] sm:$0xf] %v2417
      %2546 = vst [vmem:[#allocation3 + $0x64] sm:$0xf] %v2418
      %2547 = vst [vmem:[#allocation3 + $0x68] sm:$0xf] %v2419
      %2548 = vst [vmem:[#allocation3 + $0x6c] sm:$0xf] %v2420
      %2549 = vst [vmem:[#allocation3 + $0x70] sm:$0xf] %v2421
      %2550 = vst [vmem:[#allocation3 + $0x74] sm:$0xf] %v2422
      %2551 = vst [vmem:[#allocation3 + $0x78] sm:$0xf] %v2423
      %2552 = vst [vmem:[#allocation3 + $0x7c] sm:$0xf] %v2424
      %2553 = vst [vmem:[#allocation3 + $0x80] sm:$0xf] %v2425
      %2554 = vst [vmem:[#allocation3 + $0x84] sm:$0xf] %v2426
      %2555 = vst [vmem:[#allocation3 + $0x88] sm:$0xf] %v2427
      %2556 = vst [vmem:[#allocation3 + $0x8c] sm:$0xf] %v2428
      %2557 = vst [vmem:[#allocation3 + $0x90] sm:$0xf] %v2429
      %2558 = vst [vmem:[#allocation3 + $0x94] sm:$0xf] %v2430
      %2559 = vst [vmem:[#allocation3 + $0x98] sm:$0xf] %v2431
      %2560 = vst [vmem:[#allocation3 + $0x9c] sm:$0xf] %v2432
      %2561 = vst [vmem:[#allocation3 + $0xa0] sm:$0xf] %v2433
      %2562 = vst [vmem:[#allocation3 + $0xa4] sm:$0xf] %v2434
      %2563 = vst [vmem:[#allocation3 + $0xa8] sm:$0xf] %v2435
      %2564 = vst [vmem:[#allocation3 + $0xac] sm:$0xf] %v2436
      %2565 = vst [vmem:[#allocation3 + $0xb0] sm:$0xf] %v2437
      %2566 = vst [vmem:[#allocation3 + $0xb4] sm:$0xf] %v2438
      %2567 = vst [vmem:[#allocation3 + $0xb8] sm:$0xf] %v2439
      %2568 = vst [vmem:[#allocation3 + $0xbc] sm:$0xf] %v2440
      %2569 = vst [vmem:[#allocation3 + $0xc0] sm:$0xf] %v2441
      %2570 = vst [vmem:[#allocation3 + $0xc4] sm:$0xf] %v2442
      %2571 = vst [vmem:[#allocation3 + $0xc8] sm:$0xf] %v2443
      %2572 = vst [vmem:[#allocation3 + $0xcc] sm:$0xf] %v2444
      %2573 = vst [vmem:[#allocation3 + $0xd0] sm:$0xf] %v2445
      %2574 = vst [vmem:[#allocation3 + $0xd4] sm:$0xf] %v2446
      %2575 = vst [vmem:[#allocation3 + $0xd8] sm:$0xf] %v2447
      %2576 = vst [vmem:[#allocation3 + $0xdc] sm:$0xf] %v2448
      %2577 = vst [vmem:[#allocation3 + $0xe0] sm:$0xf] %v2449
      %2578 = vst [vmem:[#allocation3 + $0xe4] sm:$0xf] %v2450
      %2579 = vst [vmem:[#allocation3 + $0xe8] sm:$0xf] %v2451
      %2580 = vst [vmem:[#allocation3 + $0xec] sm:$0xf] %v2452
      %2581 = vst [vmem:[#allocation3 + $0xf0] sm:$0xf] %v2453
      %2582 = vst [vmem:[#allocation3 + $0xf4] sm:$0xf] %v2454
      %2583 = vst [vmem:[#allocation3 + $0xf8] sm:$0xf] %v2455
      %2584 = vst [vmem:[#allocation3 + $0xfc] sm:$0xf] %v2456
      %v2585 = vpack.c.bf16 %v2140, %v2138
      %v2586 = vpack.c.bf16 %v2144, %v2142
      %v2587 = vpack.c.bf16 %v2148, %v2146
      %v2588 = vpack.c.bf16 %v2152, %v2150
      %v2589 = vpack.c.bf16 %v2156, %v2154
      %v2590 = vpack.c.bf16 %v2160, %v2158
      %v2591 = vpack.c.bf16 %v2164, %v2162
      %v2592 = vpack.c.bf16 %v2168, %v2166
      %v2593 = vpack.c.bf16 %v2172, %v2170
      %v2594 = vpack.c.bf16 %v2176, %v2174
      %v2595 = vpack.c.bf16 %v2180, %v2178
      %v2596 = vpack.c.bf16 %v2184, %v2182
      %v2597 = vpack.c.bf16 %v2188, %v2186
      %v2598 = vpack.c.bf16 %v2192, %v2190
      %v2599 = vpack.c.bf16 %v2196, %v2194
      %v2600 = vpack.c.bf16 %v2200, %v2198
      %v2601 = vpack.c.bf16 %v2204, %v2202
      %v2602 = vpack.c.bf16 %v2208, %v2206
      %v2603 = vpack.c.bf16 %v2212, %v2210
      %v2604 = vpack.c.bf16 %v2216, %v2214
      %v2605 = vpack.c.bf16 %v2220, %v2218
      %v2606 = vpack.c.bf16 %v2224, %v2222
      %v2607 = vpack.c.bf16 %v2228, %v2226
      %v2608 = vpack.c.bf16 %v2232, %v2230
      %v2609 = vpack.c.bf16 %v2236, %v2234
      %v2610 = vpack.c.bf16 %v2240, %v2238
      %v2611 = vpack.c.bf16 %v2244, %v2242
      %v2612 = vpack.c.bf16 %v2248, %v2246
      %v2613 = vpack.c.bf16 %v2252, %v2250
      %v2614 = vpack.c.bf16 %v2256, %v2254
      %v2615 = vpack.c.bf16 %v2260, %v2258
      %v2616 = vpack.c.bf16 %v2264, %v2262
      %v2649 = vunpack.c.l.b16 %v2585
      %v2650 = vunpack.c.h.b16 %v2585
      %v2651 = vunpack.c.l.b16 %v2586
      %v2652 = vunpack.c.h.b16 %v2586
      %v2653 = vunpack.c.l.b16 %v2587
      %v2654 = vunpack.c.h.b16 %v2587
      %v2655 = vunpack.c.l.b16 %v2588
      %v2656 = vunpack.c.h.b16 %v2588
      %v2657 = vunpack.c.l.b16 %v2589
      %v2658 = vunpack.c.h.b16 %v2589
      %v2659 = vunpack.c.l.b16 %v2590
      %v2660 = vunpack.c.h.b16 %v2590
      %v2661 = vunpack.c.l.b16 %v2591
      %v2662 = vunpack.c.h.b16 %v2591
      %v2663 = vunpack.c.l.b16 %v2592
      %v2664 = vunpack.c.h.b16 %v2592
      %v2665 = vunpack.c.l.b16 %v2593
      %v2666 = vunpack.c.h.b16 %v2593
      %v2667 = vunpack.c.l.b16 %v2594
      %v2668 = vunpack.c.h.b16 %v2594
      %v2669 = vunpack.c.l.b16 %v2595
      %v2670 = vunpack.c.h.b16 %v2595
      %v2671 = vunpack.c.l.b16 %v2596
      %v2672 = vunpack.c.h.b16 %v2596
      %v2673 = vunpack.c.l.b16 %v2597
      %v2674 = vunpack.c.h.b16 %v2597
      %v2675 = vunpack.c.l.b16 %v2598
      %v2676 = vunpack.c.h.b16 %v2598
      %v2677 = vunpack.c.l.b16 %v2599
      %v2678 = vunpack.c.h.b16 %v2599
      %v2679 = vunpack.c.l.b16 %v2600
      %v2680 = vunpack.c.h.b16 %v2600
      %v2681 = vunpack.c.l.b16 %v2601
      %v2682 = vunpack.c.h.b16 %v2601
      %v2683 = vunpack.c.l.b16 %v2602
      %v2684 = vunpack.c.h.b16 %v2602
      %v2685 = vunpack.c.l.b16 %v2603
      %v2686 = vunpack.c.h.b16 %v2603
      %v2687 = vunpack.c.l.b16 %v2604
      %v2688 = vunpack.c.h.b16 %v2604
      %v2689 = vunpack.c.l.b16 %v2605
      %v2690 = vunpack.c.h.b16 %v2605
      %v2691 = vunpack.c.l.b16 %v2606
      %v2692 = vunpack.c.h.b16 %v2606
      %v2693 = vunpack.c.l.b16 %v2607
      %v2694 = vunpack.c.h.b16 %v2607
      %v2695 = vunpack.c.l.b16 %v2608
      %v2696 = vunpack.c.h.b16 %v2608
      %v2697 = vunpack.c.l.b16 %v2609
      %v2698 = vunpack.c.h.b16 %v2609
      %v2699 = vunpack.c.l.b16 %v2610
      %v2700 = vunpack.c.h.b16 %v2610
      %v2701 = vunpack.c.l.b16 %v2611
      %v2702 = vunpack.c.h.b16 %v2611
      %v2703 = vunpack.c.l.b16 %v2612
      %v2704 = vunpack.c.h.b16 %v2612
      %v2705 = vunpack.c.l.b16 %v2613
      %v2706 = vunpack.c.h.b16 %v2613
      %v2707 = vunpack.c.l.b16 %v2614
      %v2708 = vunpack.c.h.b16 %v2614
      %v2709 = vunpack.c.l.b16 %v2615
      %v2710 = vunpack.c.h.b16 %v2615
      %v2711 = vunpack.c.l.b16 %v2616
      %v2712 = vunpack.c.h.b16 %v2616
      %v2713 = vpack.c.b16 %v2649, %v2649
      %v2714 = vpack.c.b16 %v2650, %v2650
      %v2715 = vpack.c.b16 %v2651, %v2651
      %v2716 = vpack.c.b16 %v2652, %v2652
      %v2717 = vpack.c.b16 %v2653, %v2653
      %v2718 = vpack.c.b16 %v2654, %v2654
      %v2719 = vpack.c.b16 %v2655, %v2655
      %v2720 = vpack.c.b16 %v2656, %v2656
      %v2721 = vpack.c.b16 %v2657, %v2657
      %v2722 = vpack.c.b16 %v2658, %v2658
      %v2723 = vpack.c.b16 %v2659, %v2659
      %v2724 = vpack.c.b16 %v2660, %v2660
      %v2725 = vpack.c.b16 %v2661, %v2661
      %v2726 = vpack.c.b16 %v2662, %v2662
      %v2727 = vpack.c.b16 %v2663, %v2663
      %v2728 = vpack.c.b16 %v2664, %v2664
      %v2729 = vpack.c.b16 %v2665, %v2665
      %v2730 = vpack.c.b16 %v2666, %v2666
      %v2731 = vpack.c.b16 %v2667, %v2667
      %v2732 = vpack.c.b16 %v2668, %v2668
      %v2733 = vpack.c.b16 %v2669, %v2669
      %v2734 = vpack.c.b16 %v2670, %v2670
      %v2735 = vpack.c.b16 %v2671, %v2671
      %v2736 = vpack.c.b16 %v2672, %v2672
      %v2737 = vpack.c.b16 %v2673, %v2673
      %v2738 = vpack.c.b16 %v2674, %v2674
      %v2739 = vpack.c.b16 %v2675, %v2675
      %v2740 = vpack.c.b16 %v2676, %v2676
      %v2741 = vpack.c.b16 %v2677, %v2677
      %v2742 = vpack.c.b16 %v2678, %v2678
      %v2743 = vpack.c.b16 %v2679, %v2679
      %v2744 = vpack.c.b16 %v2680, %v2680
      %v2745 = vpack.c.b16 %v2681, %v2681
      %v2746 = vpack.c.b16 %v2682, %v2682
      %v2747 = vpack.c.b16 %v2683, %v2683
      %v2748 = vpack.c.b16 %v2684, %v2684
      %v2749 = vpack.c.b16 %v2685, %v2685
      %v2750 = vpack.c.b16 %v2686, %v2686
      %v2751 = vpack.c.b16 %v2687, %v2687
      %v2752 = vpack.c.b16 %v2688, %v2688
      %v2753 = vpack.c.b16 %v2689, %v2689
      %v2754 = vpack.c.b16 %v2690, %v2690
      %v2755 = vpack.c.b16 %v2691, %v2691
      %v2756 = vpack.c.b16 %v2692, %v2692
      %v2757 = vpack.c.b16 %v2693, %v2693
      %v2758 = vpack.c.b16 %v2694, %v2694
      %v2759 = vpack.c.b16 %v2695, %v2695
      %v2760 = vpack.c.b16 %v2696, %v2696
      %v2761 = vpack.c.b16 %v2697, %v2697
      %v2762 = vpack.c.b16 %v2698, %v2698
      %v2763 = vpack.c.b16 %v2699, %v2699
      %v2764 = vpack.c.b16 %v2700, %v2700
      %v2765 = vpack.c.b16 %v2701, %v2701
      %v2766 = vpack.c.b16 %v2702, %v2702
      %v2767 = vpack.c.b16 %v2703, %v2703
      %v2768 = vpack.c.b16 %v2704, %v2704
      %v2769 = vpack.c.b16 %v2705, %v2705
      %v2770 = vpack.c.b16 %v2706, %v2706
      %v2771 = vpack.c.b16 %v2707, %v2707
      %v2772 = vpack.c.b16 %v2708, %v2708
      %v2773 = vpack.c.b16 %v2709, %v2709
      %v2774 = vpack.c.b16 %v2710, %v2710
      %v2775 = vpack.c.b16 %v2711, %v2711
      %v2776 = vpack.c.b16 %v2712, %v2712
      %2841 = vst [vmem:[#allocation5] sm:$0xf] %v2713
      %2842 = vst [vmem:[#allocation5 + $0x4] sm:$0xf] %v2714
      %2843 = vst [vmem:[#allocation5 + $0x8] sm:$0xf] %v2715
      %2844 = vst [vmem:[#allocation5 + $0xc] sm:$0xf] %v2716
      %2845 = vst [vmem:[#allocation5 + $0x10] sm:$0xf] %v2717
      %2846 = vst [vmem:[#allocation5 + $0x14] sm:$0xf] %v2718
      %2847 = vst [vmem:[#allocation5 + $0x18] sm:$0xf] %v2719
      %2848 = vst [vmem:[#allocation5 + $0x1c] sm:$0xf] %v2720
      %2849 = vst [vmem:[#allocation5 + $0x20] sm:$0xf] %v2721
      %2850 = vst [vmem:[#allocation5 + $0x24] sm:$0xf] %v2722
      %2851 = vst [vmem:[#allocation5 + $0x28] sm:$0xf] %v2723
      %2852 = vst [vmem:[#allocation5 + $0x2c] sm:$0xf] %v2724
      %2853 = vst [vmem:[#allocation5 + $0x30] sm:$0xf] %v2725
      %2854 = vst [vmem:[#allocation5 + $0x34] sm:$0xf] %v2726
      %2855 = vst [vmem:[#allocation5 + $0x38] sm:$0xf] %v2727
      %2856 = vst [vmem:[#allocation5 + $0x3c] sm:$0xf] %v2728
      %2857 = vst [vmem:[#allocation5 + $0x40] sm:$0xf] %v2729
      %2858 = vst [vmem:[#allocation5 + $0x44] sm:$0xf] %v2730
      %2859 = vst [vmem:[#allocation5 + $0x48] sm:$0xf] %v2731
      %2860 = vst [vmem:[#allocation5 + $0x4c] sm:$0xf] %v2732
      %2861 = vst [vmem:[#allocation5 + $0x50] sm:$0xf] %v2733
      %2862 = vst [vmem:[#allocation5 + $0x54] sm:$0xf] %v2734
      %2863 = vst [vmem:[#allocation5 + $0x58] sm:$0xf] %v2735
      %2864 = vst [vmem:[#allocation5 + $0x5c] sm:$0xf] %v2736
      %2865 = vst [vmem:[#allocation5 + $0x60] sm:$0xf] %v2737
      %2866 = vst [vmem:[#allocation5 + $0x64] sm:$0xf] %v2738
      %2867 = vst [vmem:[#allocation5 + $0x68] sm:$0xf] %v2739
      %2868 = vst [vmem:[#allocation5 + $0x6c] sm:$0xf] %v2740
      %2869 = vst [vmem:[#allocation5 + $0x70] sm:$0xf] %v2741
      %2870 = vst [vmem:[#allocation5 + $0x74] sm:$0xf] %v2742
      %2871 = vst [vmem:[#allocation5 + $0x78] sm:$0xf] %v2743
      %2872 = vst [vmem:[#allocation5 + $0x7c] sm:$0xf] %v2744
      %2873 = vst [vmem:[#allocation5 + $0x80] sm:$0xf] %v2745
      %2874 = vst [vmem:[#allocation5 + $0x84] sm:$0xf] %v2746
      %2875 = vst [vmem:[#allocation5 + $0x88] sm:$0xf] %v2747
      %2876 = vst [vmem:[#allocation5 + $0x8c] sm:$0xf] %v2748
      %2877 = vst [vmem:[#allocation5 + $0x90] sm:$0xf] %v2749
      %2878 = vst [vmem:[#allocation5 + $0x94] sm:$0xf] %v2750
      %2879 = vst [vmem:[#allocation5 + $0x98] sm:$0xf] %v2751
      %2880 = vst [vmem:[#allocation5 + $0x9c] sm:$0xf] %v2752
      %2881 = vst [vmem:[#allocation5 + $0xa0] sm:$0xf] %v2753
      %2882 = vst [vmem:[#allocation5 + $0xa4] sm:$0xf] %v2754
      %2883 = vst [vmem:[#allocation5 + $0xa8] sm:$0xf] %v2755
      %2884 = vst [vmem:[#allocation5 + $0xac] sm:$0xf] %v2756
      %2885 = vst [vmem:[#allocation5 + $0xb0] sm:$0xf] %v2757
      %2886 = vst [vmem:[#allocation5 + $0xb4] sm:$0xf] %v2758
      %2887 = vst [vmem:[#allocation5 + $0xb8] sm:$0xf] %v2759
      %2888 = vst [vmem:[#allocation5 + $0xbc] sm:$0xf] %v2760
      %2889 = vst [vmem:[#allocation5 + $0xc0] sm:$0xf] %v2761
      %2890 = vst [vmem:[#allocation5 + $0xc4] sm:$0xf] %v2762
      %2891 = vst [vmem:[#allocation5 + $0xc8] sm:$0xf] %v2763
      %2892 = vst [vmem:[#allocation5 + $0xcc] sm:$0xf] %v2764
      %2893 = vst [vmem:[#allocation5 + $0xd0] sm:$0xf] %v2765
      %2894 = vst [vmem:[#allocation5 + $0xd4] sm:$0xf] %v2766
      %2895 = vst [vmem:[#allocation5 + $0xd8] sm:$0xf] %v2767
      %2896 = vst [vmem:[#allocation5 + $0xdc] sm:$0xf] %v2768
      %2897 = vst [vmem:[#allocation5 + $0xe0] sm:$0xf] %v2769
      %2898 = vst [vmem:[#allocation5 + $0xe4] sm:$0xf] %v2770
      %2899 = vst [vmem:[#allocation5 + $0xe8] sm:$0xf] %v2771
      %2900 = vst [vmem:[#allocation5 + $0xec] sm:$0xf] %v2772
      %2901 = vst [vmem:[#allocation5 + $0xf0] sm:$0xf] %v2773
      %2902 = vst [vmem:[#allocation5 + $0xf4] sm:$0xf] %v2774
      %2903 = vst [vmem:[#allocation5 + $0xf8] sm:$0xf] %v2775
      %2904 = vst [vmem:[#allocation5 + $0xfc] sm:$0xf] %v2776
    $region21: #{tpu_custom_call.1} parent=1 // pred_fallthru
      _
    // Predicated region
    $region22: #{tpu_custom_call.1} parent=1 // pred_check
      _
    $region23: #{tpu_custom_call.1} parent=1 // pred_check_branch
      %2906 = sbr.rel (0) target = $region25
    $region24: #{tpu_custom_call.1} parent=1 // pred_region
      %s2908 = ssub.s32 4096, 4096
      %2909 = vsyncadd [#allocation4], %s2908
      %s2910 = sshll.u32 [#allocation3], 4
      %s2911 = int_to_ptr.vmem [resolvable:$true] %s2910
      %2916 = dma.vmem_to_hbm [thread:$0]  %s2911, 4096, %s3, [#allocation4], 64, 64, 4
    $region25: #{tpu_custom_call.1} parent=1 // pred_fallthru
      _
    // Predicated region
    $region26: #{tpu_custom_call.1} parent=1 // pred_check
      _
    $region27: #{tpu_custom_call.1} parent=1 // pred_check_branch
      %2918 = sbr.rel (0) target = $region29
    $region28: #{tpu_custom_call.1} parent=1 // pred_region
      %s2920 = ssub.s32 4096, 4096
      %2921 = vsyncadd [#allocation6], %s2920
      %s2922 = sshll.u32 [#allocation5], 4
      %s2923 = int_to_ptr.vmem [resolvable:$true] %s2922
      %2928 = dma.vmem_to_hbm [thread:$0]  %s2923, 4096, %s4, [#allocation6], 64, 64, 4
    $region29: #{tpu_custom_call.1} parent=1 // pred_fallthru
      _
    // Predicated region
    $region30: #{tpu_custom_call.1} parent=1 // pred_check
      _
    $region31: #{tpu_custom_call.1} parent=1 // pred_check_branch
      %2930 = sbr.rel (0) target = $region33
    $region32: #{tpu_custom_call.1} parent=1 // pred_region
      %2931 = dma.done [#allocation4], 4096
    $region33: #{tpu_custom_call.1} parent=1 // pred_fallthru
      _
    // Predicated region
    $region34: #{tpu_custom_call.1} parent=1 // pred_check
      _
    $region35: #{tpu_custom_call.1} parent=1 // pred_check_branch
      %2933 = sbr.rel (0) target = $region37
    $region36: #{tpu_custom_call.1} parent=1 // pred_region
      %2934 = dma.done [#allocation6], 4096
    $region37: #{tpu_custom_call.1} parent=1 // pred_fallthru
      _
    %2935 = vsyncpa [#allocation4], 1
    %2936 = vsyncpa [#allocation6], 1

</llo_original>
